<compile_context>
chip_gen: v5e
topology: v5e:2x2
jax: 0.10.0
libtpu: 0.0.40
codegen_flags: <defaults>
</compile_context>

<pallas_src>
import math

import jax
import jax.numpy as jnp
from jax.experimental import pallas as pl
from jax.experimental.pallas import tpu as pltpu


# -----------------------------------------------------------------------------
# Fused encoder + decoder kernel
# -----------------------------------------------------------------------------
def cnp_kernel(cx_ref, cy_ref, tx_ref, ty_ref,
               w1x_e_ref, w1y_e_ref, w1x_d_ref,
               w2e_ref, w3e_ref, wf_ref, w2d_ref, w3d_ref,
               bias_ref,
               out_ref, r_all_ref):
    """grid = (batch_blocks, target_tiles).

    On the first target tile of a batch block the encoder runs on the Bb*Sc
    flattened context rows and caches, per batch element,
        r = mean_set(h3) @ (W4_enc @ W1_dec[:rep]) + (b4_enc @ W1_dec[:rep] + b1_dec)
    in a (Bb, H) VMEM scratch. Every target tile then only runs the two 128-wide
    decoder matmuls plus the VPU/EUP log-prob math and stores a lane-dense
    (3, Bb*t_tile) output tile.
    """
    mx = w2e_ref.dtype                       # MXU dtype (bf16 by default)
    Bb, H = r_all_ref.shape
    d_x = cx_ref.shape[1]
    Sc = cx_ref.shape[0] // Bb
    t_rows = tx_ref.shape[0]                 # Bb * t_tile
    t_tile = t_rows // Bb
    n_out = w3d_ref.shape[1]

    b1e = bias_ref[0:1, :]
    b2e = bias_ref[1:2, :]
    b3e = bias_ref[2:3, :]
    bfu = bias_ref[3:4, :]                   # b4_enc @ W1_dec[:rep] + b1_dec
    b2d = bias_ref[4:5, :]
    b3d = bias_ref[5:6, 0:n_out]

    @pl.when(pl.program_id(1) == 0)
    def _encode():
        cx = cx_ref[...]                                     # (Bb*Sc, d_x)
        # Encoder layer 1: K = d_x + 1 is tiny -> unrolled VPU broadcast-MACs.
        h = cy_ref[...] * w1y_e_ref[...]
        for k in range(d_x):
            h = h + cx[:, k:k + 1] * w1x_e_ref[k:k + 1, :]
        h = jnp.maximum(h + b1e, 0.0)                        # (Bb*Sc, H) f32
        h = jnp.maximum(jnp.dot(h.astype(mx), w2e_ref[...],
                                preferred_element_type=jnp.float32) + b2e, 0.0)
        h = jnp.maximum(jnp.dot(h.astype(mx), w3e_ref[...],
                                preferred_element_type=jnp.float32) + b3e, 0.0)
        # Per-batch-element set mean; encoder layer 4 is folded into wf host-side
        # (mean commutes with the linear map).
        # TODO(synk): for very large Sc (v5e 16 MiB scoped VMEM) chunk this loop
        # over Sc with a running sum instead of one (Bb*Sc, H) block.
        if Bb == 1:
            rep = jnp.mean(h, axis=0, keepdims=True)         # (1, H)
        else:
            rep = jnp.mean(h.reshape(Bb, Sc, H), axis=1)     # (Bb, H)
        r_all_ref[...] = (jnp.dot(rep.astype(mx), wf_ref[...],
                                  preferred_element_type=jnp.float32) + bfu)

    # ---- decoder on this target tile ----
    tx = tx_ref[...]                                         # (Bb*t_tile, d_x)
    if Bb == 1:
        h = r_all_ref[...]                                   # (1, H), broadcasts below
    else:
        h = jnp.broadcast_to(r_all_ref[...][:, None, :],
                             (Bb, t_tile, H)).reshape(t_rows, H)
    for k in range(d_x):                                     # K = d_x -> VPU MACs
        h = h + tx[:, k:k + 1] * w1x_d_ref[k:k + 1, :]
    h = jnp.maximum(h, 0.0)                                  # decoder-1 bias folded into bfu
    h = jnp.maximum(jnp.dot(h.astype(mx), w2d_ref[...],
                            preferred_element_type=jnp.float32) + b2d, 0.0)
    out = jnp.dot(h.astype(mx), w3d_ref[...],
                  preferred_element_type=jnp.float32) + b3d  # (Bb*t_tile, 2)

    # Lane-dense output: one small XLU transpose, elementwise math on (1, t) rows.
    out_t = out.T                                            # (2, Bb*t_tile)
    mu = out_t[0:1, :]
    sigma = 0.1 + 0.9 * jax.nn.softplus(out_t[1:2, :])
    y = ty_ref[...]                                          # (1, Bb*t_tile)
    # TODO(synk): when target_y is None the log-prob math is computed on zeros and
    # discarded; a static flag could skip it.
    logp = (-0.5 * jnp.square((y - mu) / sigma)
            - jnp.log(sigma) - 0.5 * math.log(2.0 * math.pi))
    out_ref[...] = jnp.concatenate([logp, mu, sigma], axis=0)   # (3, Bb*t_tile)


# -----------------------------------------------------------------------------
# Tiling heuristics
# -----------------------------------------------------------------------------
def _pick_batch_block(B, Sc, override=None):
    """Batch elements per grid step; aim for >=~256 encoder rows, cap at 8."""
    if override is not None:
        assert B % override == 0, "batch_block must divide batch size"
        return override
    best = 1
    for cand in range(1, min(B, 8) + 1):
        if B % cand == 0 and cand * Sc <= max(256, Sc):
            best = cand
    return best


def _pick_target_tile(St, override=None):
    """Cap target tiles so decoder VMEM never scales with an arbitrary St."""
    if override is not None:
        return override
    return St if St <= 512 else 512


# -----------------------------------------------------------------------------
# Wrapper
# -----------------------------------------------------------------------------
def deterministic_model_forward(query, target_y, enc_params, dec_params, *,
                                matmul_dtype=jnp.bfloat16,
                                batch_block=None, target_tile=None):
    """Matches DeterministicModel.forward: returns (log_p, mu, sigma)."""
    (context_x, context_y), target_x = query
    B, Sc, d_x = context_x.shape
    _, St, _ = target_x.shape

    (w1e, b1e), (w2e, b2e), (w3e, b3e), (w4e, b4e) = enc_params
    (w1d, b1d), (w2d, b2d), (w3d, b3d) = dec_params
    rep_size = w4e.shape[1]
    H = w1e.shape[1]
    n_out = w3d.shape[1]
    assert w2e.shape == (H, H) and w3e.shape == (H, H)
    assert w1d.shape[1] == H and w2d.shape == (H, H) and w3d.shape[0] == H

    # Split the concat-weights once on the host.
    w1x_e, w1y_e = w1e[:d_x], w1e[d_x:]            # (d_x, H), (1, H)  -> VPU, keep f32
    w1r_d, w1x_d = w1d[:rep_size], w1d[rep_size:]  # (rep, H), (d_x, H)

    # Fold encoder output layer into the decoder rep-projection (f32 on the host).
    wf = w4e @ w1r_d                               # (H, H)
    b_fused = b4e @ w1r_d + b1d                    # (1, H)

    # Pack the six bias rows into one (8, H) f32 slab (single input stream).
    bias_slab = jnp.zeros((8, H), jnp.float32)
    bias_slab = bias_slab.at[0].set(b1e[0]).at[1].set(b2e[0]).at[2].set(b3e[0])
    bias_slab = bias_slab.at[3].set(b_fused[0]).at[4].set(b2d[0])
    bias_slab = bias_slab.at[5, :n_out].set(b3d[0])

    mx = matmul_dtype
    w2e_m, w3e_m, wf_m, w2d_m, w3d_m = (w.astype(mx) for w in (w2e, w3e, wf, w2d, w3d))
    w1x_e = w1x_e.astype(jnp.float32)
    w1y_e = w1y_e.astype(jnp.float32)
    w1x_d = w1x_d.astype(jnp.float32)

    Bb = _pick_batch_block(B, Sc, batch_block)
    nB = B // Bb
    t_tile = _pick_target_tile(St, target_tile)
    num_t = pl.cdiv(St, t_tile)
    St_pad = num_t * t_tile

    ty = target_y if target_y is not None else jnp.zeros((B, St, 1), jnp.float32)
    tx = target_x
    if St_pad != St:
        tx = jnp.pad(tx, ((0, 0), (0, St_pad - St), (0, 0)))
        ty = jnp.pad(ty, ((0, 0), (0, St_pad - St), (0, 0)))

    # Host-side layout plumbing (pure data prep, stays outside the kernel):
    #  * contexts flattened per batch block -> (nB, Bb*Sc, .)
    #  * targets reordered per (block, tile) -> (nB, num_t, Bb*t_tile, d_x)
    #  * target_y made lane-dense            -> (nB, num_t, 1, Bb*t_tile)
    cx_arr = context_x.reshape(nB, Bb * Sc, d_x)
    cy_arr = context_y.reshape(nB, Bb * Sc, 1)
    tx_arr = (tx.reshape(nB, Bb, num_t, t_tile, d_x)
                .transpose(0, 2, 1, 3, 4)
                .reshape(nB, num_t, Bb * t_tile, d_x))
    ty_arr = (ty.reshape(nB, Bb, num_t, t_tile)
                .transpose(0, 2, 1, 3)
                .reshape(nB, num_t, 1, Bb * t_tile))

    def const_spec(a):
        nd = a.ndim
        return pl.BlockSpec(a.shape, lambda bb, t, nd=nd: (0,) * nd)

    grid_spec = pltpu.PrefetchScalarGridSpec(
        num_scalar_prefetch=0,
        grid=(nB, num_t),
        in_specs=[
            # per-batch-block context (re-visited across target tiles -> no re-DMA)
            pl.BlockSpec((None, Bb * Sc, d_x), lambda bb, t: (bb, 0, 0)),
            pl.BlockSpec((None, Bb * Sc, 1), lambda bb, t: (bb, 0, 0)),
            # per-(block, tile) targets (lane-dense y)
            pl.BlockSpec((None, None, Bb * t_tile, d_x), lambda bb, t: (bb, t, 0, 0)),
            pl.BlockSpec((None, None, 1, Bb * t_tile), lambda bb, t: (bb, t, 0, 0)),
            # weights: constant block index -> stay VMEM-resident across the grid
            const_spec(w1x_e), const_spec(w1y_e), const_spec(w1x_d),
            const_spec(w2e_m), const_spec(w3e_m), const_spec(wf_m),
            const_spec(w2d_m), const_spec(w3d_m),
            const_spec(bias_slab),
        ],
        out_specs=pl.BlockSpec((None, None, 3, Bb * t_tile),
                               lambda bb, t: (bb, t, 0, 0)),
        scratch_shapes=[pltpu.VMEM((Bb, H), jnp.float32)],
    )

    packed = pl.pallas_call(
        cnp_kernel,
        out_shape=jax.ShapeDtypeStruct((nB, num_t, 3, Bb * t_tile), jnp.float32),
        grid_spec=grid_spec,
        compiler_params=pltpu.CompilerParams(
            dimension_semantics=("parallel", "arbitrary"),
            vmem_limit_bytes=32 * 1024 * 1024),
    )(cx_arr, cy_arr, tx_arr, ty_arr,
      w1x_e, w1y_e, w1x_d, w2e_m, w3e_m, wf_m, w2d_m, w3d_m, bias_slab)

    # Un-permute the packed (nB, num_t, 3, Bb*t_tile) output back to (B, 3, St).
    full = (packed.reshape(nB, num_t, 3, Bb, t_tile)
                  .transpose(0, 3, 2, 1, 4)
                  .reshape(B, 3, St_pad))[:, :, :St]
    log_p = None if target_y is None else full[:, 0, :, None]
    mu = full[:, 1, :, None]
    sigma = full[:, 2, :, None]
    return log_p, mu, sigma


# -----------------------------------------------------------------------------
# Deterministic parameter init (PyTorch nn.Linear-style uniform) + JAX reference
# -----------------------------------------------------------------------------
def init_mlp(key, sizes):
    params = []
    for i in range(len(sizes) - 1):
        key, kw, kb = jax.random.split(key, 3)
        bound = 1.0 / math.sqrt(sizes[i])
        W = jax.random.uniform(kw, (sizes[i], sizes[i + 1]), jnp.float32, -bound, bound)
        b = jax.random.uniform(kb, (1, sizes[i + 1]), jnp.float32, -bound, bound)
        params.append((W, b))
    return key, params


def reference_forward(query, target_y, enc_params, dec_params):
    (context_x, context_y), target_x = query
    B, Sc, _ = context_x.shape
    h = jnp.concatenate([context_x, context_y], axis=-1).reshape(B * Sc, -1)
    for i, (W, b) in enumerate(enc_params):
        h = h @ W + b
        if i < len(enc_params) - 1:
            h = jax.nn.relu(h)
    rep = h.reshape(B, Sc, -1).mean(axis=1)

    Bt, St, _ = target_x.shape
    rep_tiled = jnp.repeat(rep[:, None, :], St, axis=1)
    h = jnp.concatenate([rep_tiled, target_x], axis=-1).reshape(Bt * St, -1)
    for i, (W, b) in enumerate(dec_params):
        h = h @ W + b
        if i < len(dec_params) - 1:
            h = jax.nn.relu(h)
    out = h.reshape(Bt, St, -1)
    mu, log_sigma = out[..., 0:1], out[..., 1:2]
    sigma = 0.1 + 0.9 * jax.nn.softplus(log_sigma)
    logp = (-0.5 * ((target_y - mu) / sigma) ** 2
            - jnp.log(sigma) - 0.5 * math.log(2.0 * math.pi))
    return logp, mu, sigma


if __name__ == "__main__":
    # Small shapes consistent with the module.
    B = 4              # batch_size
    Sc = 8             # context set size
    St = 16            # target set size
    d_x = 2            # input feature dim
    d_in = d_x + 1     # encoder input = concat(x, y)
    rep_size = 32      # representation_size

    encoder_sizes = [d_in, 128, 128, 128, rep_size]
    decoder_sizes = [rep_size + d_x, 128, 128, 2]

    key = jax.random.PRNGKey(0)
    key, enc_params = init_mlp(key, encoder_sizes)
    key, dec_params = init_mlp(key, decoder_sizes)

    key, k1, k2, k3, k4 = jax.random.split(key, 5)
    context_x = jax.random.normal(k1, (B, Sc, d_x), jnp.float32)
    context_y = jax.random.normal(k2, (B, Sc, 1), jnp.float32)
    target_x = jax.random.normal(k3, (B, St, d_x), jnp.float32)
    target_y = jax.random.normal(k4, (B, St, 1), jnp.float32)
    query = ((context_x, context_y), target_x)

    ref_logp, ref_mu, ref_sigma = reference_forward(query, target_y, enc_params, dec_params)

    # f32 matmul path: tight semantic check of the fused kernel
    # (exercises Bb=2 batch blocking and num_t=2 target-tile carry).
    log_p, mu, sigma = deterministic_model_forward(
        query, target_y, enc_params, dec_params,
        matmul_dtype=jnp.float32, batch_block=2, target_tile=8)
    jax.block_until_ready((log_p, mu, sigma))
    assert jnp.allclose(mu, ref_mu, rtol=5e-3, atol=5e-3), "mu mismatch (f32)"
    assert jnp.allclose(sigma, ref_sigma, rtol=5e-3, atol=5e-3), "sigma mismatch (f32)"
    assert jnp.allclose(log_p, ref_logp, rtol=5e-3, atol=5e-3), "log_p mismatch (f32)"

    # bf16 MXU path (production config): looser tolerance for bf16 weight rounding.
    log_p, mu, sigma = deterministic_model_forward(
        query, target_y, enc_params, dec_params,
        matmul_dtype=jnp.bfloat16, batch_block=2, target_tile=8)
    jax.block_until_ready((log_p, mu, sigma))
    assert jnp.allclose(mu, ref_mu, rtol=5e-2, atol=5e-2), "mu mismatch (bf16)"
    assert jnp.allclose(sigma, ref_sigma, rtol=5e-2, atol=5e-2), "sigma mismatch (bf16)"
    assert jnp.allclose(log_p, ref_logp, rtol=5e-2, atol=5e-2), "log_p mismatch (bf16)"

    print("KERNEL_OK")
</pallas_src>

<mosaic_0001>
module attributes {stable_mosaic.version = 11 : i64} {
  func.func @cnp_kernel(%arg0: i32, %arg1: i32, %arg2: memref<1x16x2xf32, #tpu.memory_space<vmem>>, %arg3: memref<1x16x1xf32, #tpu.memory_space<vmem>>, %arg4: memref<1x1x16x2xf32, #tpu.memory_space<vmem>>, %arg5: memref<1x1x1x16xf32, #tpu.memory_space<vmem>>, %arg6: memref<2x128xf32, #tpu.memory_space<vmem>>, %arg7: memref<1x128xf32, #tpu.memory_space<vmem>>, %arg8: memref<2x128xf32, #tpu.memory_space<vmem>>, %arg9: memref<128x128xf32, #tpu.memory_space<vmem>>, %arg10: memref<128x128xf32, #tpu.memory_space<vmem>>, %arg11: memref<128x128xf32, #tpu.memory_space<vmem>>, %arg12: memref<128x128xf32, #tpu.memory_space<vmem>>, %arg13: memref<128x2xf32, #tpu.memory_space<vmem>>, %arg14: memref<8x128xf32, #tpu.memory_space<vmem>>, %arg15: memref<1x1x3x16xf32, #tpu.memory_space<vmem>>, %arg16: memref<2x128xf32, #tpu.memory_space<vmem>>) attributes {dimension_semantics = [#tpu.dimension_semantics<parallel>, #tpu.dimension_semantics<arbitrary>], iteration_bounds = array<i64: 2, 2>, scalar_prefetch = 0 : i64, scratch_operands = 1 : i64, tpu.core_type = #tpu.core_type<tc>, window_params = [{transform_indices = @transform_0, window_bounds = array<i64: 1, 16, 2>}, {transform_indices = @transform_1, window_bounds = array<i64: 1, 16, 1>}, {transform_indices = @transform_2, window_bounds = array<i64: 1, 1, 16, 2>}, {transform_indices = @transform_3, window_bounds = array<i64: 1, 1, 1, 16>}, {pipeline_mode = #tpu.pipeline_mode<synchronous>, transform_indices = @transform_4, window_bounds = array<i64: 2, 128>}, {pipeline_mode = #tpu.pipeline_mode<synchronous>, transform_indices = @transform_5, window_bounds = array<i64: 1, 128>}, {pipeline_mode = #tpu.pipeline_mode<synchronous>, transform_indices = @transform_6, window_bounds = array<i64: 2, 128>}, {pipeline_mode = #tpu.pipeline_mode<synchronous>, transform_indices = @transform_7, window_bounds = array<i64: 128, 128>}, {pipeline_mode = #tpu.pipeline_mode<synchronous>, transform_indices = @transform_8, window_bounds = array<i64: 128, 128>}, {pipeline_mode = #tpu.pipeline_mode<synchronous>, transform_indices = @transform_9, window_bounds = array<i64: 128, 128>}, {pipeline_mode = #tpu.pipeline_mode<synchronous>, transform_indices = @transform_10, window_bounds = array<i64: 128, 128>}, {pipeline_mode = #tpu.pipeline_mode<synchronous>, transform_indices = @transform_11, window_bounds = array<i64: 128, 2>}, {pipeline_mode = #tpu.pipeline_mode<synchronous>, transform_indices = @transform_12, window_bounds = array<i64: 8, 128>}, {transform_indices = @transform_13, window_bounds = array<i64: 1, 1, 3, 16>}]} {
    %c0 = arith.constant 0 : index
    %c0_0 = arith.constant 0 : index
    %0 = vector.load %arg14[%c0, %c0_0] : memref<8x128xf32, #tpu.memory_space<vmem>>, vector<1x128xf32>
    %c1 = arith.constant 1 : index
    %c0_1 = arith.constant 0 : index
    %1 = vector.load %arg14[%c1, %c0_1] : memref<8x128xf32, #tpu.memory_space<vmem>>, vector<1x128xf32>
    %c2 = arith.constant 2 : index
    %c0_2 = arith.constant 0 : index
    %2 = vector.load %arg14[%c2, %c0_2] : memref<8x128xf32, #tpu.memory_space<vmem>>, vector<1x128xf32>
    %c3 = arith.constant 3 : index
    %c0_3 = arith.constant 0 : index
    %3 = vector.load %arg14[%c3, %c0_3] : memref<8x128xf32, #tpu.memory_space<vmem>>, vector<1x128xf32>
    %c4 = arith.constant 4 : index
    %c0_4 = arith.constant 0 : index
    %4 = vector.load %arg14[%c4, %c0_4] : memref<8x128xf32, #tpu.memory_space<vmem>>, vector<1x128xf32>
    %c5 = arith.constant 5 : index
    %c0_5 = arith.constant 0 : index
    %5 = vector.load %arg14[%c5, %c0_5] : memref<8x128xf32, #tpu.memory_space<vmem>>, vector<1x2xf32>
    %c0_i32 = arith.constant 0 : i32
    %6 = arith.cmpi eq, %arg1, %c0_i32 : i32
    %7 = arith.extui %6 : i1 to i32
    %c0_i32_6 = arith.constant 0 : i32
    %8 = arith.cmpi ne, %7, %c0_i32_6 : i32
    scf.if %8 {
      %c0_38 = arith.constant 0 : index
      %c0_39 = arith.constant 0 : index
      %c0_40 = arith.constant 0 : index
      %76 = vector.load %arg2[%c0_38, %c0_39, %c0_40] : memref<1x16x2xf32, #tpu.memory_space<vmem>>, vector<1x16x2xf32>
      %77 = vector.shape_cast %76 : vector<1x16x2xf32> to vector<16x2xf32>
      %c0_41 = arith.constant 0 : index
      %c0_42 = arith.constant 0 : index
      %c0_43 = arith.constant 0 : index
      %78 = vector.load %arg3[%c0_41, %c0_42, %c0_43] : memref<1x16x1xf32, #tpu.memory_space<vmem>>, vector<1x16x1xf32>
      %79 = vector.shape_cast %78 : vector<1x16x1xf32> to vector<16x1xf32>
      %c0_44 = arith.constant 0 : index
      %c0_45 = arith.constant 0 : index
      %80 = vector.load %arg7[%c0_44, %c0_45] : memref<1x128xf32, #tpu.memory_space<vmem>>, vector<1x128xf32>
      %81 = vector.broadcast %79 : vector<16x1xf32> to vector<16x128xf32>
      %82 = vector.broadcast %80 : vector<1x128xf32> to vector<16x128xf32>
      %83 = arith.mulf %81, %82 : vector<16x128xf32>
      %84 = vector.extract_strided_slice %77 {offsets = [0, 0], sizes = [16, 1], strides = [1, 1]} : vector<16x2xf32> to vector<16x1xf32>
      %c0_46 = arith.constant 0 : index
      %c0_47 = arith.constant 0 : index
      %85 = vector.load %arg6[%c0_46, %c0_47] : memref<2x128xf32, #tpu.memory_space<vmem>>, vector<1x128xf32>
      %86 = vector.broadcast %84 : vector<16x1xf32> to vector<16x128xf32>
      %87 = vector.broadcast %85 : vector<1x128xf32> to vector<16x128xf32>
      %88 = arith.mulf %86, %87 : vector<16x128xf32>
      %89 = arith.addf %83, %88 : vector<16x128xf32>
      %90 = vector.extract_strided_slice %77 {offsets = [0, 1], sizes = [16, 1], strides = [1, 1]} : vector<16x2xf32> to vector<16x1xf32>
      %c1_48 = arith.constant 1 : index
      %c0_49 = arith.constant 0 : index
      %91 = vector.load %arg6[%c1_48, %c0_49] : memref<2x128xf32, #tpu.memory_space<vmem>>, vector<1x128xf32>
      %92 = vector.broadcast %90 : vector<16x1xf32> to vector<16x128xf32>
      %93 = vector.broadcast %91 : vector<1x128xf32> to vector<16x128xf32>
      %94 = arith.mulf %92, %93 : vector<16x128xf32>
      %95 = arith.addf %89, %94 : vector<16x128xf32>
      %96 = vector.broadcast %0 : vector<1x128xf32> to vector<16x128xf32>
      %97 = arith.addf %95, %96 : vector<16x128xf32>
      %cst_50 = arith.constant 0.000000e+00 : f32
      %98 = vector.broadcast %cst_50 : f32 to vector<16x128xf32>
      %99 = arith.maximumf %97, %98 : vector<16x128xf32>
      %c0_51 = arith.constant 0 : index
      %c0_52 = arith.constant 0 : index
      %100 = vector.load %arg9[%c0_51, %c0_52] : memref<128x128xf32, #tpu.memory_space<vmem>>, vector<128x128xf32>
      %cst_53 = arith.constant dense<0.000000e+00> : vector<16x128xf32>
      %101 = tpu.matmul %99, %100, %cst_53 {dimension_numbers = #tpu.dot_dimension_numbers<[1], [0], [0], [1], [0, 0, 1, 1], [], []>} : vector<16x128xf32>, vector<128x128xf32>, vector<16x128xf32> -> vector<16x128xf32>
      %102 = vector.broadcast %1 : vector<1x128xf32> to vector<16x128xf32>
      %103 = arith.addf %101, %102 : vector<16x128xf32>
      %cst_54 = arith.constant 0.000000e+00 : f32
      %104 = vector.broadcast %cst_54 : f32 to vector<16x128xf32>
      %105 = arith.maximumf %103, %104 : vector<16x128xf32>
      %c0_55 = arith.constant 0 : index
      %c0_56 = arith.constant 0 : index
      %106 = vector.load %arg10[%c0_55, %c0_56] : memref<128x128xf32, #tpu.memory_space<vmem>>, vector<128x128xf32>
      %cst_57 = arith.constant dense<0.000000e+00> : vector<16x128xf32>
      %107 = tpu.matmul %105, %106, %cst_57 {dimension_numbers = #tpu.dot_dimension_numbers<[1], [0], [0], [1], [0, 0, 1, 1], [], []>} : vector<16x128xf32>, vector<128x128xf32>, vector<16x128xf32> -> vector<16x128xf32>
      %108 = vector.broadcast %2 : vector<1x128xf32> to vector<16x128xf32>
      %109 = arith.addf %107, %108 : vector<16x128xf32>
      %cst_58 = arith.constant 0.000000e+00 : f32
      %110 = vector.broadcast %cst_58 : f32 to vector<16x128xf32>
      %111 = arith.maximumf %109, %110 : vector<16x128xf32>
      %112 = vector.shape_cast %111 : vector<16x128xf32> to vector<2x8x128xf32>
      %cst_59 = arith.constant dense<0.000000e+00> : vector<2x128xf32>
      %113 = vector.multi_reduction <add>, %112, %cst_59 [1] : vector<2x8x128xf32> to vector<2x128xf32>
      %cst_60 = arith.constant 8.000000e+00 : f32
      %114 = vector.broadcast %cst_60 : f32 to vector<2x128xf32>
      %115 = arith.divf %113, %114 : vector<2x128xf32>
      %c0_61 = arith.constant 0 : index
      %c0_62 = arith.constant 0 : index
      %116 = vector.load %arg11[%c0_61, %c0_62] : memref<128x128xf32, #tpu.memory_space<vmem>>, vector<128x128xf32>
      %cst_63 = arith.constant dense<0.000000e+00> : vector<2x128xf32>
      %117 = tpu.matmul %115, %116, %cst_63 {dimension_numbers = #tpu.dot_dimension_numbers<[1], [0], [0], [1], [0, 0, 1, 1], [], []>} : vector<2x128xf32>, vector<128x128xf32>, vector<2x128xf32> -> vector<2x128xf32>
      %118 = vector.broadcast %3 : vector<1x128xf32> to vector<2x128xf32>
      %119 = arith.addf %117, %118 : vector<2x128xf32>
      %c0_64 = arith.constant 0 : index
      %c0_65 = arith.constant 0 : index
      %120 = vector.load %arg16[%c0_64, %c0_65] : memref<2x128xf32, #tpu.memory_space<vmem>>, vector<2x128xf32>
      tpu.vector_store %arg16[%c0_64, %c0_65], %119 {strides = array<i32>} : memref<2x128xf32, #tpu.memory_space<vmem>>, vector<2x128xf32>,
    } else {
    }
    %c0_7 = arith.constant 0 : index
    %c0_8 = arith.constant 0 : index
    %c0_9 = arith.constant 0 : index
    %c0_10 = arith.constant 0 : index
    %9 = vector.load %arg4[%c0_7, %c0_8, %c0_9, %c0_10] : memref<1x1x16x2xf32, #tpu.memory_space<vmem>>, vector<1x1x16x2xf32>
    %10 = vector.shape_cast %9 : vector<1x1x16x2xf32> to vector<16x2xf32>
    %c0_11 = arith.constant 0 : index
    %c0_12 = arith.constant 0 : index
    %11 = vector.load %arg16[%c0_11, %c0_12] : memref<2x128xf32, #tpu.memory_space<vmem>>, vector<2x128xf32>
    %12 = vector.shape_cast %11 : vector<2x128xf32> to vector<2x1x128xf32>
    %13 = vector.shape_cast %12 : vector<2x1x128xf32> to vector<2x1x128xf32>
    %14 = vector.broadcast %13 : vector<2x1x128xf32> to vector<2x8x128xf32>
    %15 = vector.shape_cast %14 : vector<2x8x128xf32> to vector<16x128xf32>
    %16 = vector.extract_strided_slice %10 {offsets = [0, 0], sizes = [16, 1], strides = [1, 1]} : vector<16x2xf32> to vector<16x1xf32>
    %c0_13 = arith.constant 0 : index
    %c0_14 = arith.constant 0 : index
    %17 = vector.load %arg8[%c0_13, %c0_14] : memref<2x128xf32, #tpu.memory_space<vmem>>, vector<1x128xf32>
    %18 = vector.broadcast %16 : vector<16x1xf32> to vector<16x128xf32>
    %19 = vector.broadcast %17 : vector<1x128xf32> to vector<16x128xf32>
    %20 = arith.mulf %18, %19 : vector<16x128xf32>
    %21 = arith.addf %15, %20 : vector<16x128xf32>
    %22 = vector.extract_strided_slice %10 {offsets = [0, 1], sizes = [16, 1], strides = [1, 1]} : vector<16x2xf32> to vector<16x1xf32>
    %c1_15 = arith.constant 1 : index
    %c0_16 = arith.constant 0 : index
    %23 = vector.load %arg8[%c1_15, %c0_16] : memref<2x128xf32, #tpu.memory_space<vmem>>, vector<1x128xf32>
    %24 = vector.broadcast %22 : vector<16x1xf32> to vector<16x128xf32>
    %25 = vector.broadcast %23 : vector<1x128xf32> to vector<16x128xf32>
    %26 = arith.mulf %24, %25 : vector<16x128xf32>
    %27 = arith.addf %21, %26 : vector<16x128xf32>
    %cst = arith.constant 0.000000e+00 : f32
    %28 = vector.broadcast %cst : f32 to vector<16x128xf32>
    %29 = arith.maximumf %27, %28 : vector<16x128xf32>
    %c0_17 = arith.constant 0 : index
    %c0_18 = arith.constant 0 : index
    %30 = vector.load %arg12[%c0_17, %c0_18] : memref<128x128xf32, #tpu.memory_space<vmem>>, vector<128x128xf32>
    %cst_19 = arith.constant dense<0.000000e+00> : vector<16x128xf32>
    %31 = tpu.matmul %29, %30, %cst_19 {dimension_numbers = #tpu.dot_dimension_numbers<[1], [0], [0], [1], [0, 0, 1, 1], [], []>} : vector<16x128xf32>, vector<128x128xf32>, vector<16x128xf32> -> vector<16x128xf32>
    %32 = vector.broadcast %4 : vector<1x128xf32> to vector<16x128xf32>
    %33 = arith.addf %31, %32 : vector<16x128xf32>
    %cst_20 = arith.constant 0.000000e+00 : f32
    %34 = vector.broadcast %cst_20 : f32 to vector<16x128xf32>
    %35 = arith.maximumf %33, %34 : vector<16x128xf32>
    %c0_21 = arith.constant 0 : index
    %c0_22 = arith.constant 0 : index
    %36 = vector.load %arg13[%c0_21, %c0_22] : memref<128x2xf32, #tpu.memory_space<vmem>>, vector<128x2xf32>
    %cst_23 = arith.constant dense<0.000000e+00> : vector<16x2xf32>
    %37 = tpu.matmul %35, %36, %cst_23 {dimension_numbers = #tpu.dot_dimension_numbers<[1], [0], [0], [1], [0, 0, 1, 1], [], []>} : vector<16x128xf32>, vector<128x2xf32>, vector<16x2xf32> -> vector<16x2xf32>
    %38 = vector.broadcast %5 : vector<1x2xf32> to vector<16x2xf32>
    %39 = arith.addf %37, %38 : vector<16x2xf32>
    %40 = tpu.transpose %39, [1, 0] : vector<16x2xf32> -> vector<2x16xf32>
    %41 = vector.extract_strided_slice %40 {offsets = [0, 0], sizes = [1, 16], strides = [1, 1]} : vector<2x16xf32> to vector<1x16xf32>
    %42 = vector.extract_strided_slice %40 {offsets = [1, 0], sizes = [1, 16], strides = [1, 1]} : vector<2x16xf32> to vector<1x16xf32>
    %cst_24 = arith.constant 0.000000e+00 : f32
    %43 = vector.broadcast %cst_24 : f32 to vector<1x16xf32>
    %44 = arith.maximumf %42, %43 : vector<1x16xf32>
    %45 = vector.broadcast %cst_24 : f32 to vector<1x16xf32>
    %46 = arith.subf %42, %45 : vector<1x16xf32>
    %47 = arith.cmpf one, %46, %46 : vector<1x16xf32>
    %48 = vector.broadcast %cst_24 : f32 to vector<1x16xf32>
    %49 = arith.addf %42, %48 : vector<1x16xf32>
    %50 = math.absf %46 : vector<1x16xf32>
    %cst_25 = arith.constant 0.000000e+00 : f32
    %51 = vector.broadcast %cst_25 : f32 to vector<1x16xf32>
    %52 = arith.subf %51, %50 : vector<1x16xf32>
    %53 = math.exp %52 : vector<1x16xf32>
    %54 = math.log1p %53 : vector<1x16xf32>
    %55 = arith.addf %44, %54 : vector<1x16xf32>
    %56 = arith.select %47, %49, %55 : vector<1x16xi1>, vector<1x16xf32>
    %cst_26 = arith.constant 0.899999976 : f32
    %57 = vector.broadcast %cst_26 : f32 to vector<1x16xf32>
    %58 = arith.mulf %57, %56 : vector<1x16xf32>
    %cst_27 = arith.constant 1.000000e-01 : f32
    %59 = vector.broadcast %cst_27 : f32 to vector<1x16xf32>
    %60 = arith.addf %59, %58 : vector<1x16xf32>
    %c0_28 = arith.constant 0 : index
    %c0_29 = arith.constant 0 : index
    %c0_30 = arith.constant 0 : index
    %c0_31 = arith.constant 0 : index
    %61 = vector.load %arg5[%c0_28, %c0_29, %c0_30, %c0_31] : memref<1x1x1x16xf32, #tpu.memory_space<vmem>>, vector<1x1x1x16xf32>
    %62 = vector.shape_cast %61 : vector<1x1x1x16xf32> to vector<1x16xf32>
    %63 = arith.subf %62, %41 : vector<1x16xf32>
    %64 = arith.divf %63, %60 : vector<1x16xf32>
    %65 = arith.mulf %64, %64 : vector<1x16xf32>
    %cst_32 = arith.constant -5.000000e-01 : f32
    %66 = vector.broadcast %cst_32 : f32 to vector<1x16xf32>
    %67 = arith.mulf %66, %65 : vector<1x16xf32>
    %68 = math.log %60 : vector<1x16xf32>
    %69 = arith.subf %67, %68 : vector<1x16xf32>
    %cst_33 = arith.constant 0.918938517 : f32
    %70 = vector.broadcast %cst_33 : f32 to vector<1x16xf32>
    %71 = arith.subf %69, %70 : vector<1x16xf32>
    %72 = tpu.concatenate %71, %41, %60 in 0 : vector<1x16xf32>, vector<1x16xf32>, vector<1x16xf32> -> vector<3x16xf32>
    %c0_34 = arith.constant 0 : index
    %c0_35 = arith.constant 0 : index
    %c0_36 = arith.constant 0 : index
    %c0_37 = arith.constant 0 : index
    %73 = vector.load %arg15[%c0_34, %c0_35, %c0_36, %c0_37] : memref<1x1x3x16xf32, #tpu.memory_space<vmem>>, vector<1x1x3x16xf32>
    %74 = vector.shape_cast %73 : vector<1x1x3x16xf32> to vector<3x16xf32>
    %75 = vector.shape_cast %72 : vector<3x16xf32> to vector<1x1x3x16xf32>
    tpu.vector_store %arg15[%c0_34, %c0_35, %c0_36, %c0_37], %75 {strides = array<i32>} : memref<1x1x3x16xf32, #tpu.memory_space<vmem>>, vector<1x1x3x16xf32>,
    return
  }
  func.func @transform_0(%arg0: i32, %arg1: i32) -> (i32, i32, i32) {
    %c0_i32 = arith.constant 0 : i32
    %c0_i32_0 = arith.constant 0 : i32
    %c0_i32_1 = arith.constant 0 : i32
    return %arg0, %c0_i32, %c0_i32_0 : i32, i32, i32
  }
  func.func @transform_1(%arg0: i32, %arg1: i32) -> (i32, i32, i32) {
    %c0_i32 = arith.constant 0 : i32
    %c0_i32_0 = arith.constant 0 : i32
    %c0_i32_1 = arith.constant 0 : i32
    return %arg0, %c0_i32, %c0_i32_0 : i32, i32, i32
  }
  func.func @transform_2(%arg0: i32, %arg1: i32) -> (i32, i32, i32, i32) {
    %c0_i32 = arith.constant 0 : i32
    %c0_i32_0 = arith.constant 0 : i32
    %c0_i32_1 = arith.constant 0 : i32
    return %arg0, %arg1, %c0_i32, %c0_i32_0 : i32, i32, i32, i32
  }
  func.func @transform_3(%arg0: i32, %arg1: i32) -> (i32, i32, i32, i32) {
    %c0_i32 = arith.constant 0 : i32
    %c0_i32_0 = arith.constant 0 : i32
    %c0_i32_1 = arith.constant 0 : i32
    return %arg0, %arg1, %c0_i32, %c0_i32_0 : i32, i32, i32, i32
  }
  func.func @transform_4(%arg0: i32, %arg1: i32) -> (i32, i32) {
    %c0_i32 = arith.constant 0 : i32
    %c0_i32_0 = arith.constant 0 : i32
    %c0_i32_1 = arith.constant 0 : i32
    return %c0_i32, %c0_i32_0 : i32, i32
  }
  func.func @transform_5(%arg0: i32, %arg1: i32) -> (i32, i32) {
    %c0_i32 = arith.constant 0 : i32
    %c0_i32_0 = arith.constant 0 : i32
    %c0_i32_1 = arith.constant 0 : i32
    return %c0_i32, %c0_i32_0 : i32, i32
  }
  func.func @transform_6(%arg0: i32, %arg1: i32) -> (i32, i32) {
    %c0_i32 = arith.constant 0 : i32
    %c0_i32_0 = arith.constant 0 : i32
    %c0_i32_1 = arith.constant 0 : i32
    return %c0_i32, %c0_i32_0 : i32, i32
  }
  func.func @transform_7(%arg0: i32, %arg1: i32) -> (i32, i32) {
    %c0_i32 = arith.constant 0 : i32
    %c0_i32_0 = arith.constant 0 : i32
    %c0_i32_1 = arith.constant 0 : i32
    return %c0_i32, %c0_i32_0 : i32, i32
  }
  func.func @transform_8(%arg0: i32, %arg1: i32) -> (i32, i32) {
    %c0_i32 = arith.constant 0 : i32
    %c0_i32_0 = arith.constant 0 : i32
    %c0_i32_1 = arith.constant 0 : i32
    return %c0_i32, %c0_i32_0 : i32, i32
  }
  func.func @transform_9(%arg0: i32, %arg1: i32) -> (i32, i32) {
    %c0_i32 = arith.constant 0 : i32
    %c0_i32_0 = arith.constant 0 : i32
    %c0_i32_1 = arith.constant 0 : i32
    return %c0_i32, %c0_i32_0 : i32, i32
  }
  func.func @transform_10(%arg0: i32, %arg1: i32) -> (i32, i32) {
    %c0_i32 = arith.constant 0 : i32
    %c0_i32_0 = arith.constant 0 : i32
    %c0_i32_1 = arith.constant 0 : i32
    return %c0_i32, %c0_i32_0 : i32, i32
  }
  func.func @transform_11(%arg0: i32, %arg1: i32) -> (i32, i32) {
    %c0_i32 = arith.constant 0 : i32
    %c0_i32_0 = arith.constant 0 : i32
    %c0_i32_1 = arith.constant 0 : i32
    return %c0_i32, %c0_i32_0 : i32, i32
  }
  func.func @transform_12(%arg0: i32, %arg1: i32) -> (i32, i32) {
    %c0_i32 = arith.constant 0 : i32
    %c0_i32_0 = arith.constant 0 : i32
    %c0_i32_1 = arith.constant 0 : i32
    return %c0_i32, %c0_i32_0 : i32, i32
  }
  func.func @transform_13(%arg0: i32, %arg1: i32) -> (i32, i32, i32, i32) {
    %c0_i32 = arith.constant 0 : i32
    %c0_i32_0 = arith.constant 0 : i32
    %c0_i32_1 = arith.constant 0 : i32
    return %arg0, %arg1, %c0_i32, %c0_i32_0 : i32, i32, i32, i32
  }
}

</mosaic_0001>

<llo_original>
// kernel: tpu_custom_call.1
$region0: #{tpu_custom_call.1}
  #allocation0 [shape = 'u32[]', space=smem, size = 0x4, offset = 0x4, fixed_abs, tag = 'smem constant byte address 0x4 - core index']
  #allocation1 [shape = 'u32[72,128]{1,0:T(1,128)}', space=vmem, size = 0x9000, scoped, tag = 'internal scratch']
  #allocation2 [shape = 'f32[2,128]{1,0:T(2,128)}', space=vmem, size = 0x400, scoped, tag = 'scratch operand']
  %s0 = inlined_call_operand.vmem [shape: f32[2,16,2], index: 0, kind: input, shape index: {}]
  %s1 = inlined_call_operand.vmem [shape: f32[2,16,1], index: 1, kind: input, shape index: {}]
  %s2 = inlined_call_operand.vmem [shape: f32[2,2,16,2], index: 2, kind: input, shape index: {}]
  %s3 = inlined_call_operand.vmem [shape: f32[2,2,1,16], index: 3, kind: input, shape index: {}]
  %s4 = inlined_call_operand.vmem [shape: f32[2,128], index: 4, kind: input, shape index: {}]
  %s5 = inlined_call_operand.vmem [shape: f32[1,128], index: 5, kind: input, shape index: {}]
  %s6 = inlined_call_operand.vmem [shape: f32[2,128], index: 6, kind: input, shape index: {}]
  %s7 = inlined_call_operand.vmem [shape: f32[128,128], index: 7, kind: input, shape index: {}]
  %s8 = inlined_call_operand.hbm [shape: f32[128,128], index: 8, kind: input, shape index: {}]
  %s9 = inlined_call_operand.hbm [shape: f32[128,128], index: 9, kind: input, shape index: {}]
  %s10 = inlined_call_operand.hbm [shape: f32[128,128], index: 10, kind: input, shape index: {}]
  %s11 = inlined_call_operand.vmem [shape: f32[128,2], index: 11, kind: input, shape index: {}]
  %s12 = inlined_call_operand.vmem [shape: f32[8,128], index: 12, kind: input, shape index: {}]
  %s13 = inlined_call_operand.vmem [shape: f32[2,2,3,16], index: 13, kind: output, shape index: {}]
  %s14 = sld [smem:[#allocation0]]
  $region101: #{tpu_custom_call.1} parent=0
    _
  %s16 = ssub.s32 1, %s14
  %s17 = scalar_select 0, %s16, %s14
  $region1: #{tpu_custom_call.1} parent=0
    #allocation3 [shape = 'u8[65536]{0}', space=vmem, size = 0x10000, scoped, tag = 'input window, operand 8, single buffered']
    #allocation4 [shape = 's32[2]{0}', space=sflag, size = 0x8, scoped, tag = 'scoped memory for tpu_custom_call.1']
    #allocation5 [shape = 'u8[65536]{0}', space=vmem, size = 0x10000, scoped, tag = 'input window, operand 9, single buffered']
    #allocation6 [shape = 's32[1]{0}', space=sflag, size = 0x4, scoped, tag = 'scoped memory for tpu_custom_call.1']
    #allocation7 [shape = 'u8[65536]{0}', space=vmem, size = 0x10000, scoped, tag = 'input window, operand 10, single buffered']
    %18 = vsyncpa [#allocation4], 0
    %19 = vsyncpa [#allocation6], 0
    loop: start=0, step=1, limit=6
    $region2: #{tpu_custom_call.1} parent=1 // loop_pre_header
      _
    $region3: #{tpu_custom_call.1} parent=1 // loop_header
      %s21 = sphi 0, %s25
      %p22 = scmp.ge.s32.totalorder %s21, 6
      %s28 = sphi 0, %s40
      %s29 = sphi 0, %s36
      %s30 = sphi 0, %s28
      %s31 = sphi 0, %s29
      %s32 = sphi 0, %s30
      %s33 = sphi 0, %s31
      %s43 = sphi 0, %s45
      %s46 = sphi 0, %s43
      %s47 = sphi 0, %s46
      %s63 = sphi 0, %s47
      %s69 = sphi 0, %s71
      %s72 = sphi 0, %s69
      %s73 = sphi 0, %s72
      %s89 = sphi 0, %s73
      %s97 = sphi 0, %s99
      %s100 = sphi 0, %s97
      %s101 = sphi 0, %s100
      %s117 = sphi 0, %s101
      %s125 = sphi 0, %s127
      %s128 = sphi 0, %s125
      %s129 = sphi 0, %s128
      %s145 = sphi 0, %s129
      %s149 = sphi 0, %s149
      %s151 = sphi 0, %s149
      %s152 = sphi 0, %s151
      %s166 = sphi 0, %s152
      %s170 = sphi 0, %s170
      %s172 = sphi 0, %s170
      %s173 = sphi 0, %s172
      %s187 = sphi 0, %s173
      %s191 = sphi 0, %s191
      %s193 = sphi 0, %s191
      %s194 = sphi 0, %s193
      %s208 = sphi 0, %s194
      %s212 = sphi 0, %s212
      %s214 = sphi 0, %s212
      %s215 = sphi 0, %s214
      %s229 = sphi 0, %s215
      %s233 = sphi 0, %s233
      %s235 = sphi 0, %s233
      %s236 = sphi 0, %s235
      %s250 = sphi 0, %s236
      %s254 = sphi 0, %s254
      %s256 = sphi 0, %s254
      %s257 = sphi 0, %s256
      %s271 = sphi 0, %s257
      %s275 = sphi 0, %s275
      %s277 = sphi 0, %s275
      %s278 = sphi 0, %s277
      %s292 = sphi 0, %s278
      %s296 = sphi 0, %s296
      %s298 = sphi 0, %s296
      %s299 = sphi 0, %s298
      %s313 = sphi 0, %s299
      %s317 = sphi 0, %s317
      %s319 = sphi 0, %s317
      %s320 = sphi 0, %s319
      %s334 = sphi 0, %s320
      %s342 = sphi 0, %s344
      %s345 = sphi 0, %s342
      %s346 = sphi 0, %s345
      %s362 = sphi 0, %s346
    $region4: #{tpu_custom_call.1} parent=1 // loop_header_branch
      %24 = sbr.rel (%p22) target = $region8
    $region5: #{tpu_custom_call.1} parent=1 // loop_body
      %s26 = ssub.s32 %s21, 1
      %s27 = ssub.s32 %s21, 2
      %s34 = sadd.s32 1, %s29
      %p35 = scmp.ge.s32.totalorder %s34, 2
      %s36 = scalar_select %p35, 0, %s34
      %s37 = sadd.s32 1, %s28
      %s38 = scalar_select %p35, %s37, %s28
      %p39 = scmp.ge.s32.totalorder %s38, 2
      %s40 = scalar_select %p39, 0, %s38
      %s41 = ssub.s32 %s28, %s40
      %p42 = scmp.eq.s32.totalorder %s41, 0
      %s44 = sadd.s32 %s43, 1
      %s45 = scalar_select %p42, %s43, %s44
      %p48 = pneg %p42
      %p49 = scmp.eq.s32.totalorder %s21, 3
      %p50 = por %p48, %p49
      %p51 = scmp.ne.s32.totalorder %s43, %s46
      %p52 = scmp.eq.s32.totalorder %s21, 0
      %p53 = por %p51, %p52
      %p54 = scmp.ne.s32.totalorder %s43, %s46
      %p55 = scmp.eq.s32.totalorder %s26, 3
      %p56 = por %p54, %p55
      %p57 = scmp.ne.s32.totalorder %s46, %s47
      %p58 = scmp.eq.s32.totalorder %s26, 0
      %p59 = por %p57, %p58
      %p60 = scmp.ne.s32.totalorder %s46, %s47
      %p61 = scmp.eq.s32.totalorder %s27, 3
      %p62 = por %p60, %p61
      %p64 = scmp.ne.s32.totalorder %s47, %s63
      %p65 = scmp.eq.s32.totalorder %s27, 0
      %p66 = por %p64, %p65
      %s67 = ssub.s32 %s28, %s40
      %p68 = scmp.eq.s32.totalorder %s67, 0
      %s70 = sadd.s32 %s69, 1
      %s71 = scalar_select %p68, %s69, %s70
      %p74 = pneg %p68
      %p75 = scmp.eq.s32.totalorder %s21, 3
      %p76 = por %p74, %p75
      %p77 = scmp.ne.s32.totalorder %s69, %s72
      %p78 = scmp.eq.s32.totalorder %s21, 0
      %p79 = por %p77, %p78
      %p80 = scmp.ne.s32.totalorder %s69, %s72
      %p81 = scmp.eq.s32.totalorder %s26, 3
      %p82 = por %p80, %p81
      %p83 = scmp.ne.s32.totalorder %s72, %s73
      %p84 = scmp.eq.s32.totalorder %s26, 0
      %p85 = por %p83, %p84
      %p86 = scmp.ne.s32.totalorder %s72, %s73
      %p87 = scmp.eq.s32.totalorder %s27, 3
      %p88 = por %p86, %p87
      %p90 = scmp.ne.s32.totalorder %s73, %s89
      %p91 = scmp.eq.s32.totalorder %s27, 0
      %p92 = por %p90, %p91
      %s93 = ssub.s32 %s28, %s40
      %s94 = ssub.s32 %s29, %s36
      %s95 = sor.u32 %s93, %s94
      %p96 = scmp.eq.s32.totalorder %s95, 0
      %s98 = sadd.s32 %s97, 1
      %s99 = scalar_select %p96, %s97, %s98
      %p102 = pneg %p96
      %p103 = scmp.eq.s32.totalorder %s21, 3
      %p104 = por %p102, %p103
      %p105 = scmp.ne.s32.totalorder %s97, %s100
      %p106 = scmp.eq.s32.totalorder %s21, 0
      %p107 = por %p105, %p106
      %p108 = scmp.ne.s32.totalorder %s97, %s100
      %p109 = scmp.eq.s32.totalorder %s26, 3
      %p110 = por %p108, %p109
      %p111 = scmp.ne.s32.totalorder %s100, %s101
      %p112 = scmp.eq.s32.totalorder %s26, 0
      %p113 = por %p111, %p112
      %p114 = scmp.ne.s32.totalorder %s100, %s101
      %p115 = scmp.eq.s32.totalorder %s27, 3
      %p116 = por %p114, %p115
      %p118 = scmp.ne.s32.totalorder %s101, %s117
      %p119 = scmp.eq.s32.totalorder %s27, 0
      %p120 = por %p118, %p119
      %s121 = ssub.s32 %s28, %s40
      %s122 = ssub.s32 %s29, %s36
      %s123 = sor.u32 %s121, %s122
      %p124 = scmp.eq.s32.totalorder %s123, 0
      %s126 = sadd.s32 %s125, 1
      %s127 = scalar_select %p124, %s125, %s126
      %p130 = pneg %p124
      %p131 = scmp.eq.s32.totalorder %s21, 3
      %p132 = por %p130, %p131
      %p133 = scmp.ne.s32.totalorder %s125, %s128
      %p134 = scmp.eq.s32.totalorder %s21, 0
      %p135 = por %p133, %p134
      %p136 = scmp.ne.s32.totalorder %s125, %s128
      %p137 = scmp.eq.s32.totalorder %s26, 3
      %p138 = por %p136, %p137
      %p139 = scmp.ne.s32.totalorder %s128, %s129
      %p140 = scmp.eq.s32.totalorder %s26, 0
      %p141 = por %p139, %p140
      %p142 = scmp.ne.s32.totalorder %s128, %s129
      %p143 = scmp.eq.s32.totalorder %s27, 3
      %p144 = por %p142, %p143
      %p146 = scmp.ne.s32.totalorder %s129, %s145
      %p147 = scmp.eq.s32.totalorder %s27, 0
      %p148 = por %p146, %p147
      %s150 = sadd.s32 %s149, 1
      %p153 = scmp.eq.s32.totalorder %s21, 3
      %p154 = scmp.ne.s32.totalorder %s149, %s151
      %p155 = scmp.eq.s32.totalorder %s21, 0
      %p156 = por %p154, %p155
      %p157 = scmp.ne.s32.totalorder %s149, %s151
      %p158 = scmp.eq.s32.totalorder %s26, 3
      %p159 = por %p157, %p158
      %p160 = scmp.ne.s32.totalorder %s151, %s152
      %p161 = scmp.eq.s32.totalorder %s26, 0
      %p162 = por %p160, %p161
      %p163 = scmp.ne.s32.totalorder %s151, %s152
      %p164 = scmp.eq.s32.totalorder %s27, 3
      %p165 = por %p163, %p164
      %p167 = scmp.ne.s32.totalorder %s152, %s166
      %p168 = scmp.eq.s32.totalorder %s27, 0
      %p169 = por %p167, %p168
      %s171 = sadd.s32 %s170, 1
      %p174 = scmp.eq.s32.totalorder %s21, 3
      %p175 = scmp.ne.s32.totalorder %s170, %s172
      %p176 = scmp.eq.s32.totalorder %s21, 0
      %p177 = por %p175, %p176
      %p178 = scmp.ne.s32.totalorder %s170, %s172
      %p179 = scmp.eq.s32.totalorder %s26, 3
      %p180 = por %p178, %p179
      %p181 = scmp.ne.s32.totalorder %s172, %s173
      %p182 = scmp.eq.s32.totalorder %s26, 0
      %p183 = por %p181, %p182
      %p184 = scmp.ne.s32.totalorder %s172, %s173
      %p185 = scmp.eq.s32.totalorder %s27, 3
      %p186 = por %p184, %p185
      %p188 = scmp.ne.s32.totalorder %s173, %s187
      %p189 = scmp.eq.s32.totalorder %s27, 0
      %p190 = por %p188, %p189
      %s192 = sadd.s32 %s191, 1
      %p195 = scmp.eq.s32.totalorder %s21, 3
      %p196 = scmp.ne.s32.totalorder %s191, %s193
      %p197 = scmp.eq.s32.totalorder %s21, 0
      %p198 = por %p196, %p197
      %p199 = scmp.ne.s32.totalorder %s191, %s193
      %p200 = scmp.eq.s32.totalorder %s26, 3
      %p201 = por %p199, %p200
      %p202 = scmp.ne.s32.totalorder %s193, %s194
      %p203 = scmp.eq.s32.totalorder %s26, 0
      %p204 = por %p202, %p203
      %p205 = scmp.ne.s32.totalorder %s193, %s194
      %p206 = scmp.eq.s32.totalorder %s27, 3
      %p207 = por %p205, %p206
      %p209 = scmp.ne.s32.totalorder %s194, %s208
      %p210 = scmp.eq.s32.totalorder %s27, 0
      %p211 = por %p209, %p210
      %s213 = sadd.s32 %s212, 1
      %p216 = scmp.eq.s32.totalorder %s21, 3
      %p217 = scmp.ne.s32.totalorder %s212, %s214
      %p218 = scmp.eq.s32.totalorder %s21, 0
      %p219 = por %p217, %p218
      %p220 = scmp.ne.s32.totalorder %s212, %s214
      %p221 = scmp.eq.s32.totalorder %s26, 3
      %p222 = por %p220, %p221
      %p223 = scmp.ne.s32.totalorder %s214, %s215
      %p224 = scmp.eq.s32.totalorder %s26, 0
      %p225 = por %p223, %p224
      %p226 = scmp.ne.s32.totalorder %s214, %s215
      %p227 = scmp.eq.s32.totalorder %s27, 3
      %p228 = por %p226, %p227
      %p230 = scmp.ne.s32.totalorder %s215, %s229
      %p231 = scmp.eq.s32.totalorder %s27, 0
      %p232 = por %p230, %p231
      %s234 = sadd.s32 %s233, 1
      %p237 = scmp.eq.s32.totalorder %s21, 3
      %p238 = scmp.ne.s32.totalorder %s233, %s235
      %p239 = scmp.eq.s32.totalorder %s21, 0
      %p240 = por %p238, %p239
      %p241 = scmp.ne.s32.totalorder %s233, %s235
      %p242 = scmp.eq.s32.totalorder %s26, 3
      %p243 = por %p241, %p242
      %p244 = scmp.ne.s32.totalorder %s235, %s236
      %p245 = scmp.eq.s32.totalorder %s26, 0
      %p246 = por %p244, %p245
      %p247 = scmp.ne.s32.totalorder %s235, %s236
      %p248 = scmp.eq.s32.totalorder %s27, 3
      %p249 = por %p247, %p248
      %p251 = scmp.ne.s32.totalorder %s236, %s250
      %p252 = scmp.eq.s32.totalorder %s27, 0
      %p253 = por %p251, %p252
      %s255 = sadd.s32 %s254, 1
      %p258 = scmp.eq.s32.totalorder %s21, 3
      %p259 = scmp.ne.s32.totalorder %s254, %s256
      %p260 = scmp.eq.s32.totalorder %s21, 0
      %p261 = por %p259, %p260
      %p262 = scmp.ne.s32.totalorder %s254, %s256
      %p263 = scmp.eq.s32.totalorder %s26, 3
      %p264 = por %p262, %p263
      %p265 = scmp.ne.s32.totalorder %s256, %s257
      %p266 = scmp.eq.s32.totalorder %s26, 0
      %p267 = por %p265, %p266
      %p268 = scmp.ne.s32.totalorder %s256, %s257
      %p269 = scmp.eq.s32.totalorder %s27, 3
      %p270 = por %p268, %p269
      %p272 = scmp.ne.s32.totalorder %s257, %s271
      %p273 = scmp.eq.s32.totalorder %s27, 0
      %p274 = por %p272, %p273
      %s276 = sadd.s32 %s275, 1
      %p279 = scmp.eq.s32.totalorder %s21, 3
      %p280 = scmp.ne.s32.totalorder %s275, %s277
      %p281 = scmp.eq.s32.totalorder %s21, 0
      %p282 = por %p280, %p281
      %p283 = scmp.ne.s32.totalorder %s275, %s277
      %p284 = scmp.eq.s32.totalorder %s26, 3
      %p285 = por %p283, %p284
      %p286 = scmp.ne.s32.totalorder %s277, %s278
      %p287 = scmp.eq.s32.totalorder %s26, 0
      %p288 = por %p286, %p287
      %p289 = scmp.ne.s32.totalorder %s277, %s278
      %p290 = scmp.eq.s32.totalorder %s27, 3
      %p291 = por %p289, %p290
      %p293 = scmp.ne.s32.totalorder %s278, %s292
      %p294 = scmp.eq.s32.totalorder %s27, 0
      %p295 = por %p293, %p294
      %s297 = sadd.s32 %s296, 1
      %p300 = scmp.eq.s32.totalorder %s21, 3
      %p301 = scmp.ne.s32.totalorder %s296, %s298
      %p302 = scmp.eq.s32.totalorder %s21, 0
      %p303 = por %p301, %p302
      %p304 = scmp.ne.s32.totalorder %s296, %s298
      %p305 = scmp.eq.s32.totalorder %s26, 3
      %p306 = por %p304, %p305
      %p307 = scmp.ne.s32.totalorder %s298, %s299
      %p308 = scmp.eq.s32.totalorder %s26, 0
      %p309 = por %p307, %p308
      %p310 = scmp.ne.s32.totalorder %s298, %s299
      %p311 = scmp.eq.s32.totalorder %s27, 3
      %p312 = por %p310, %p311
      %p314 = scmp.ne.s32.totalorder %s299, %s313
      %p315 = scmp.eq.s32.totalorder %s27, 0
      %p316 = por %p314, %p315
      %s318 = sadd.s32 %s317, 1
      %p321 = scmp.eq.s32.totalorder %s21, 3
      %p322 = scmp.ne.s32.totalorder %s317, %s319
      %p323 = scmp.eq.s32.totalorder %s21, 0
      %p324 = por %p322, %p323
      %p325 = scmp.ne.s32.totalorder %s317, %s319
      %p326 = scmp.eq.s32.totalorder %s26, 3
      %p327 = por %p325, %p326
      %p328 = scmp.ne.s32.totalorder %s319, %s320
      %p329 = scmp.eq.s32.totalorder %s26, 0
      %p330 = por %p328, %p329
      %p331 = scmp.ne.s32.totalorder %s319, %s320
      %p332 = scmp.eq.s32.totalorder %s27, 3
      %p333 = por %p331, %p332
      %p335 = scmp.ne.s32.totalorder %s320, %s334
      %p336 = scmp.eq.s32.totalorder %s27, 0
      %p337 = por %p335, %p336
      %s338 = ssub.s32 %s28, %s40
      %s339 = ssub.s32 %s29, %s36
      %s340 = sor.u32 %s338, %s339
      %p341 = scmp.eq.s32.totalorder %s340, 0
      %s343 = sadd.s32 %s342, 1
      %s344 = scalar_select %p341, %s342, %s343
      %p347 = pneg %p341
      %p348 = scmp.eq.s32.totalorder %s21, 3
      %p349 = por %p347, %p348
      %p350 = scmp.ne.s32.totalorder %s342, %s345
      %p351 = scmp.eq.s32.totalorder %s21, 0
      %p352 = por %p350, %p351
      %p353 = scmp.ne.s32.totalorder %s342, %s345
      %p354 = scmp.eq.s32.totalorder %s26, 3
      %p355 = por %p353, %p354
      %p356 = scmp.ne.s32.totalorder %s345, %s346
      %p357 = scmp.eq.s32.totalorder %s26, 0
      %p358 = por %p356, %p357
      %p359 = scmp.ne.s32.totalorder %s345, %s346
      %p360 = scmp.eq.s32.totalorder %s27, 3
      %p361 = por %p359, %p360
      %p363 = scmp.ne.s32.totalorder %s346, %s362
      %p364 = scmp.eq.s32.totalorder %s27, 0
      %p365 = por %p363, %p364
      %p366 = scmp.le.s32.totalorder 1, %s21
      %p367 = scmp.lt.s32.totalorder %s21, 5
      %p368 = pnand %p366, %p367
      %p369 = pneg %p368
      // Predicated region
      $region9: #{tpu_custom_call.1} parent=5 // pred_check
        _
      $region10: #{tpu_custom_call.1} parent=5 // pred_check_branch
        %371 = sbr.rel (%p368) target = $region12
      $region11: #{tpu_custom_call.1} parent=5 // pred_region
        %s372 = ssub.s32 %s21, 1
        // Predicated region
        $region13: #{tpu_custom_call.1} parent=11 // pred_check
          %p373 = pneg %p162
        $region14: #{tpu_custom_call.1} parent=11 // pred_check_branch
          %375 = sbr.rel (%p373) target = $region16
        $region15: #{tpu_custom_call.1} parent=11 // pred_region
          _
        $region16: #{tpu_custom_call.1} parent=11 // pred_fallthru
          _
        // Predicated region
        $region17: #{tpu_custom_call.1} parent=11 // pred_check
          %p376 = pneg %p183
        $region18: #{tpu_custom_call.1} parent=11 // pred_check_branch
          %378 = sbr.rel (%p376) target = $region20
        $region19: #{tpu_custom_call.1} parent=11 // pred_region
          _
        $region20: #{tpu_custom_call.1} parent=11 // pred_fallthru
          _
        // Predicated region
        $region21: #{tpu_custom_call.1} parent=11 // pred_check
          %p379 = pneg %p204
        $region22: #{tpu_custom_call.1} parent=11 // pred_check_branch
          %381 = sbr.rel (%p379) target = $region24
        $region23: #{tpu_custom_call.1} parent=11 // pred_region
          _
        $region24: #{tpu_custom_call.1} parent=11 // pred_fallthru
          _
        // Predicated region
        $region25: #{tpu_custom_call.1} parent=11 // pred_check
          %p382 = pneg %p225
        $region26: #{tpu_custom_call.1} parent=11 // pred_check_branch
          %384 = sbr.rel (%p382) target = $region28
        $region27: #{tpu_custom_call.1} parent=11 // pred_region
          _
        $region28: #{tpu_custom_call.1} parent=11 // pred_fallthru
          _
        // Predicated region
        $region29: #{tpu_custom_call.1} parent=11 // pred_check
          %p385 = pneg %p246
        $region30: #{tpu_custom_call.1} parent=11 // pred_check_branch
          %387 = sbr.rel (%p385) target = $region32
        $region31: #{tpu_custom_call.1} parent=11 // pred_region
          %389 = vsyncadd [#allocation4], 0
          %s390 = sshll.u32 %s8, 4
          %s391 = int_to_ptr.hbm [resolvable:$true] %s390
          %s392 = sshll.u32 [#allocation3], 4
          %s393 = int_to_ptr.vmem [resolvable:$true] %s392
          %398 = dma.hbm_to_vmem [thread:$0]  %s391, 2048, %s393, [#allocation4], 128, 128, 8
        $region32: #{tpu_custom_call.1} parent=11 // pred_fallthru
          _
        // Predicated region
        $region33: #{tpu_custom_call.1} parent=11 // pred_check
          %p399 = pneg %p267
        $region34: #{tpu_custom_call.1} parent=11 // pred_check_branch
          %401 = sbr.rel (%p399) target = $region36
        $region35: #{tpu_custom_call.1} parent=11 // pred_region
          %403 = vsyncadd [#allocation6], 0
          %s404 = sshll.u32 %s9, 4
          %s405 = int_to_ptr.hbm [resolvable:$true] %s404
          %s406 = sshll.u32 [#allocation5], 4
          %s407 = int_to_ptr.vmem [resolvable:$true] %s406
          %412 = dma.hbm_to_vmem [thread:$0]  %s405, 2048, %s407, [#allocation6], 128, 128, 8
        $region36: #{tpu_custom_call.1} parent=11 // pred_fallthru
          _
        // Predicated region
        $region37: #{tpu_custom_call.1} parent=11 // pred_check
          %p413 = pneg %p288
        $region38: #{tpu_custom_call.1} parent=11 // pred_check_branch
          %415 = sbr.rel (%p413) target = $region40
        $region39: #{tpu_custom_call.1} parent=11 // pred_region
          %417 = vsyncadd [#allocation6], 0
          %s418 = sshll.u32 %s10, 4
          %s419 = int_to_ptr.hbm [resolvable:$true] %s418
          %s420 = sshll.u32 [#allocation7], 4
          %s421 = int_to_ptr.vmem [resolvable:$true] %s420
          %426 = dma.hbm_to_vmem [thread:$0]  %s419, 2048, %s421, [#allocation6], 128, 128, 8
        $region40: #{tpu_custom_call.1} parent=11 // pred_fallthru
          _
        // Predicated region
        $region41: #{tpu_custom_call.1} parent=11 // pred_check
          %p427 = pneg %p309
        $region42: #{tpu_custom_call.1} parent=11 // pred_check_branch
          %429 = sbr.rel (%p427) target = $region44
        $region43: #{tpu_custom_call.1} parent=11 // pred_region
          _
        $region44: #{tpu_custom_call.1} parent=11 // pred_fallthru
          _
        // Predicated region
        $region45: #{tpu_custom_call.1} parent=11 // pred_check
          %p430 = pneg %p330
        $region46: #{tpu_custom_call.1} parent=11 // pred_check_branch
          %432 = sbr.rel (%p430) target = $region48
        $region47: #{tpu_custom_call.1} parent=11 // pred_region
          _
        $region48: #{tpu_custom_call.1} parent=11 // pred_fallthru
          _
      $region12: #{tpu_custom_call.1} parent=5 // pred_fallthru
        _
      %p433 = scmp.lt.s32.totalorder %s21, 4
      // Predicated region
      $region49: #{tpu_custom_call.1} parent=5 // pred_check
        %p434 = pneg %p433
      $region50: #{tpu_custom_call.1} parent=5 // pred_check_branch
        %436 = sbr.rel (%p434) target = $region52
      $region51: #{tpu_custom_call.1} parent=5 // pred_region
        // Predicated region
        $region53: #{tpu_custom_call.1} parent=51 // pred_check
          %p437 = pneg %p53
        $region54: #{tpu_custom_call.1} parent=51 // pred_check_branch
          %439 = sbr.rel (%p437) target = $region56
        $region55: #{tpu_custom_call.1} parent=51 // pred_region
          %p440 = scmp.lt.s32.totalorder %s28, 1
          %s441 = scalar_select %p440, %s28, 1
          %s442 = smul.addr %s441, 2
          %s443 = smul.addr %s442, 8
          %s444 = scalar_lea.vmem %s0, %s443
        $region56: #{tpu_custom_call.1} parent=51 // pred_fallthru
          _
        // Predicated region
        $region57: #{tpu_custom_call.1} parent=51 // pred_check
          %p445 = pneg %p79
        $region58: #{tpu_custom_call.1} parent=51 // pred_check_branch
          %447 = sbr.rel (%p445) target = $region60
        $region59: #{tpu_custom_call.1} parent=51 // pred_region
          %p448 = scmp.lt.s32.totalorder %s28, 1
          %s449 = scalar_select %p448, %s28, 1
          %s450 = smul.addr %s449, 2
          %s451 = smul.addr %s450, 8
          %s452 = scalar_lea.vmem %s1, %s451
        $region60: #{tpu_custom_call.1} parent=51 // pred_fallthru
          _
        // Predicated region
        $region61: #{tpu_custom_call.1} parent=51 // pred_check
          %p453 = pneg %p107
        $region62: #{tpu_custom_call.1} parent=51 // pred_check_branch
          %455 = sbr.rel (%p453) target = $region64
        $region63: #{tpu_custom_call.1} parent=51 // pred_region
          %p456 = scmp.lt.s32.totalorder %s28, 1
          %s457 = scalar_select %p456, %s28, 1
          %p458 = scmp.lt.s32.totalorder %s29, 1
          %s459 = scalar_select %p458, %s29, 1
          %s460 = smul.addr %s459, 2
          %s461 = smul.addr %s457, 4
          %s462 = sadd.s32 %s460, %s461
          %s463 = smul.addr %s462, 8
          %s464 = scalar_lea.vmem %s2, %s463
        $region64: #{tpu_custom_call.1} parent=51 // pred_fallthru
          _
        // Predicated region
        $region65: #{tpu_custom_call.1} parent=51 // pred_check
          %p465 = pneg %p135
        $region66: #{tpu_custom_call.1} parent=51 // pred_check_branch
          %467 = sbr.rel (%p465) target = $region68
        $region67: #{tpu_custom_call.1} parent=51 // pred_region
          %p468 = scmp.lt.s32.totalorder %s28, 1
          %s469 = scalar_select %p468, %s28, 1
          %p470 = scmp.lt.s32.totalorder %s29, 1
          %s471 = scalar_select %p470, %s29, 1
          %s472 = smul.addr %s469, 2
          %s473 = sadd.s32 %s471, %s472
          %s474 = scalar_lea.vmem %s3, %s473
        $region68: #{tpu_custom_call.1} parent=51 // pred_fallthru
          _
      $region52: #{tpu_custom_call.1} parent=5 // pred_fallthru
        _
      %p475 = scmp.le.s32.totalorder 1, %s21
      %p476 = scmp.lt.s32.totalorder %s21, 5
      %p477 = pnand %p475, %p476
      %p478 = pneg %p477
      // Predicated region
      $region69: #{tpu_custom_call.1} parent=5 // pred_check
        _
      $region70: #{tpu_custom_call.1} parent=5 // pred_check_branch
        %480 = sbr.rel (%p477) target = $region72
      $region71: #{tpu_custom_call.1} parent=5 // pred_region
        %s481 = ssub.s32 %s21, 1
        // Predicated region
        $region73: #{tpu_custom_call.1} parent=71 // pred_check
          %p482 = pneg %p246
        $region74: #{tpu_custom_call.1} parent=71 // pred_check_branch
          %484 = sbr.rel (%p482) target = $region76
        $region75: #{tpu_custom_call.1} parent=71 // pred_region
          %486 = dma.done [#allocation4], 2048
        $region76: #{tpu_custom_call.1} parent=71 // pred_fallthru
          _
        // Predicated region
        $region77: #{tpu_custom_call.1} parent=71 // pred_check
          %p487 = pneg %p267
        $region78: #{tpu_custom_call.1} parent=71 // pred_check_branch
          %489 = sbr.rel (%p487) target = $region80
        $region79: #{tpu_custom_call.1} parent=71 // pred_region
          %491 = dma.done [#allocation6], 2048
        $region80: #{tpu_custom_call.1} parent=71 // pred_fallthru
          _
        // Predicated region
        $region81: #{tpu_custom_call.1} parent=71 // pred_check
          %p492 = pneg %p288
        $region82: #{tpu_custom_call.1} parent=71 // pred_check_branch
          %494 = sbr.rel (%p492) target = $region84
        $region83: #{tpu_custom_call.1} parent=71 // pred_region
          %496 = dma.done [#allocation6], 2048
        $region84: #{tpu_custom_call.1} parent=71 // pred_fallthru
          _
        %p497 = scmp.lt.s32.totalorder %s30, 1
        %s498 = scalar_select %p497, %s30, 1
        %s499 = smul.addr %s498, 2
        %s500 = smul.addr %s499, 8
        %s501 = scalar_lea.vmem %s0, %s500
        %p502 = pneg %p59
        %p503 = pneg %p56
        %p504 = scmp.lt.s32.totalorder %s30, 1
        %s505 = scalar_select %p504, %s30, 1
        %s506 = smul.addr %s505, 2
        %s507 = smul.addr %s506, 8
        %s508 = scalar_lea.vmem %s1, %s507
        %p509 = pneg %p85
        %p510 = pneg %p82
        %p511 = scmp.lt.s32.totalorder %s30, 1
        %s512 = scalar_select %p511, %s30, 1
        %p513 = scmp.lt.s32.totalorder %s31, 1
        %s514 = scalar_select %p513, %s31, 1
        %s515 = smul.addr %s514, 2
        %s516 = smul.addr %s512, 4
        %s517 = sadd.s32 %s515, %s516
        %s518 = smul.addr %s517, 8
        %s519 = scalar_lea.vmem %s2, %s518
        %p520 = pneg %p113
        %p521 = pneg %p110
        %p522 = scmp.lt.s32.totalorder %s30, 1
        %s523 = scalar_select %p522, %s30, 1
        %p524 = scmp.lt.s32.totalorder %s31, 1
        %s525 = scalar_select %p524, %s31, 1
        %s526 = smul.addr %s523, 2
        %s527 = sadd.s32 %s525, %s526
        %s528 = scalar_lea.vmem %s3, %s527
        %p529 = pneg %p141
        %p530 = pneg %p138
        %p531 = pneg %p162
        %p532 = pneg %p159
        %p533 = pneg %p183
        %p534 = pneg %p180
        %p535 = pneg %p204
        %p536 = pneg %p201
        %p537 = pneg %p225
        %p538 = pneg %p222
        %p539 = pneg %p246
        %p540 = pneg %p243
        %p541 = pneg %p267
        %p542 = pneg %p264
        %p543 = pneg %p288
        %p544 = pneg %p285
        %p545 = pneg %p309
        %p546 = pneg %p306
        %p547 = pneg %p330
        %p548 = pneg %p327
        %p549 = pneg %p358
        %p550 = pneg %p355
        %p551 = scmp.lt.s32.totalorder %s30, 1
        %s552 = scalar_select %p551, %s30, 1
        %p553 = scmp.lt.s32.totalorder %s31, 1
        %s554 = scalar_select %p553, %s31, 1
        %s555 = smul.addr %s552, 2
        %s556 = sadd.s32 %s554, %s555
        %s557 = smul.addr %s556, 4
        %s558 = scalar_lea.vmem %s13, %s557
        %p559 = scmp.lt.s32.totalorder %s30, 1
        %s560 = scalar_select %p559, %s30, 1
        %s561 = smul.addr %s560, 2
        %s562 = smul.addr %s561, 8
        %s563 = scalar_lea.vmem %s0, %s562
        %p564 = scmp.lt.s32.totalorder %s30, 1
        %s565 = scalar_select %p564, %s30, 1
        %s566 = smul.addr %s565, 2
        %s567 = smul.addr %s566, 8
        %s568 = scalar_lea.vmem %s1, %s567
        %p569 = scmp.lt.s32.totalorder %s30, 1
        %s570 = scalar_select %p569, %s30, 1
        %p571 = scmp.lt.s32.totalorder %s31, 1
        %s572 = scalar_select %p571, %s31, 1
        %s573 = smul.addr %s572, 2
        %s574 = smul.addr %s570, 4
        %s575 = sadd.s32 %s573, %s574
        %s576 = smul.addr %s575, 8
        %s577 = scalar_lea.vmem %s2, %s576
        %p578 = scmp.lt.s32.totalorder %s30, 1
        %s579 = scalar_select %p578, %s30, 1
        %p580 = scmp.lt.s32.totalorder %s31, 1
        %s581 = scalar_select %p580, %s31, 1
        %s582 = smul.addr %s579, 2
        %s583 = sadd.s32 %s581, %s582
        %s584 = scalar_lea.vmem %s3, %s583
        %p585 = scmp.lt.s32.totalorder %s30, 1
        %s586 = scalar_select %p585, %s30, 1
        %p587 = scmp.lt.s32.totalorder %s31, 1
        %s588 = scalar_select %p587, %s31, 1
        %s589 = smul.addr %s586, 2
        %s590 = sadd.s32 %s588, %s589
        %s591 = smul.addr %s590, 4
        %s592 = scalar_lea.vmem %s13, %s591
        %v593 = vld [vmem:[%s12] sm:$0x1]
        %v594 = vld [vmem:[%s12 + $0x1] sm:$0x1]
        %v595 = vld [vmem:[%s12 + $0x2] sm:$0x1]
        %v596 = vld [vmem:[%s12 + $0x3] sm:$0x1]
        %v597 = vld [vmem:[%s12 + $0x4] sm:$0x1]
        %v598 = vld [vmem:[%s12 + $0x5] sm:$0x1]
        %p599 = scmp.eq.s32.totalorder %s31, 0
        // Predicated region
        $region85: #{tpu_custom_call.1} parent=71 // pred_check
          %p600 = pneg %p599
        $region86: #{tpu_custom_call.1} parent=71 // pred_check_branch
          %602 = sbr.rel (%p600) target = $region88
        $region87: #{tpu_custom_call.1} parent=71 // pred_region
          %v603 = vld [vmem:[%s563] sm:$0xff]
          %v604 = vld [vmem:[%s563 + $0x8] sm:$0xff]
          %v605 = vld [vmem:[%s568] sm:$0xff]
          %v606 = vld [vmem:[%s568 + $0x8] sm:$0xff]
          %v607 = vld [vmem:[%s5] sm:$0x1]
          %609 = vset.pattern.permute.xlu0 0
          %610 = vperm.xlu0 %609, %v605
          %v611 = vpop.permute.xlu0 %610
          %614 = vset.pattern.permute.xlu0 0
          %615 = vperm.xlu0 %614, %v606
          %v616 = vpop.permute.xlu0 %615
          %v619 = vperm.slane %v607, 0
          %v621 = vmul.f32 %v611, %v619
          %v622 = vmul.f32 %v616, %v619
          %v623 = vld [vmem:[%s4] sm:$0x1]
          %625 = vset.pattern.permute.xlu0 0
          %626 = vperm.xlu0 %625, %v603
          %v627 = vpop.permute.xlu0 %626
          %630 = vset.pattern.permute.xlu0 0
          %631 = vperm.xlu0 %630, %v604
          %v632 = vpop.permute.xlu0 %631
          %v634 = vperm.slane %v623, 0
          %v635 = vmul.f32 %v627, %v634
          %v636 = vmul.f32 %v632, %v634
          %v637 = vadd.f32 %v621, %v635
          %v638 = vadd.f32 %v622, %v636
          %v639 = vld [vmem:[%s4 + $0x1] sm:$0x1]
          %640 = vset.pattern.permute.xlu0 1
          %641 = vperm.xlu0 %640, %v603
          %v642 = vpop.permute.xlu0 %641
          %644 = vset.pattern.permute.xlu0 1
          %645 = vperm.xlu0 %644, %v604
          %v646 = vpop.permute.xlu0 %645
          %v648 = vperm.slane %v639, 0
          %v649 = vmul.f32 %v642, %v648
          %v650 = vmul.f32 %v646, %v648
          %v651 = vadd.f32 %v637, %v649
          %v652 = vadd.f32 %v638, %v650
          %v653 = vperm.slane %v593, 0
          %v654 = vadd.f32 %v651, %v653
          %v655 = vadd.f32 %v652, %v653
          %v656 = vmax.f32 %v654, 0.0
          %v657 = vmax.f32 %v655, 0.0
          %v658 = vld [vmem:[%s7] sm:$0xff]
          %v659 = vld [vmem:[%s7 + $0x8] sm:$0xff]
          %v660 = vld [vmem:[%s7 + $0x10] sm:$0xff]
          %v661 = vld [vmem:[%s7 + $0x18] sm:$0xff]
          %v662 = vld [vmem:[%s7 + $0x20] sm:$0xff]
          %v663 = vld [vmem:[%s7 + $0x28] sm:$0xff]
          %v664 = vld [vmem:[%s7 + $0x30] sm:$0xff]
          %v665 = vld [vmem:[%s7 + $0x38] sm:$0xff]
          %v666 = vld [vmem:[%s7 + $0x40] sm:$0xff]
          %v667 = vld [vmem:[%s7 + $0x48] sm:$0xff]
          %v668 = vld [vmem:[%s7 + $0x50] sm:$0xff]
          %v669 = vld [vmem:[%s7 + $0x58] sm:$0xff]
          %v670 = vld [vmem:[%s7 + $0x60] sm:$0xff]
          %v671 = vld [vmem:[%s7 + $0x68] sm:$0xff]
          %v672 = vld [vmem:[%s7 + $0x70] sm:$0xff]
          %v673 = vld [vmem:[%s7 + $0x78] sm:$0xff]
          %v674 = vperm.slane %v594, 0
          %675 = vmatpush.msra.mxu0 %v673
          %676 = vmatpush.msra.mxu0 %v672
          %677 = vmatpush.msra.mxu0 %v671
          %678 = vmatpush.msra.mxu0 %v670
          %679 = vmatpush.msra.mxu0 %v669
          %680 = vmatpush.msra.mxu0 %v668
          %681 = vmatpush.msra.mxu0 %v667
          %682 = vmatpush.msra.mxu0 %v666
          %683 = vmatpush.msra.mxu0 %v665
          %684 = vmatpush.msra.mxu0 %v664
          %685 = vmatpush.msra.mxu0 %v663
          %686 = vmatpush.msra.mxu0 %v662
          %687 = vmatpush.msra.mxu0 %v661
          %688 = vmatpush.msra.mxu0 %v660
          %689 = vmatpush.msra.mxu0 %v659
          %690 = vmatpush.msra.mxu0 %v658
          %691 = vmatmul.f32.gmra.mxu0 %v656
          %v692 = vpop.f32.mrf.mxu0
          %v693 = vadd.f32 %v674, %v692
          %694 = vmatmul.f32.gmra.mxu0 %v657
          %v695 = vpop.f32.mrf.mxu0
          %v696 = vadd.f32 %v674, %v695
          %697 = vdwg.mxu0
          %v698 = vmax.f32 %v693, 0.0
          %v699 = vmax.f32 %v696, 0.0
          %v700 = vld [vmem:[#allocation3] sm:$0xff]
          %v701 = vld [vmem:[#allocation3 + $0x8] sm:$0xff]
          %v702 = vld [vmem:[#allocation3 + $0x10] sm:$0xff]
          %v703 = vld [vmem:[#allocation3 + $0x18] sm:$0xff]
          %v704 = vld [vmem:[#allocation3 + $0x20] sm:$0xff]
          %v705 = vld [vmem:[#allocation3 + $0x28] sm:$0xff]
          %v706 = vld [vmem:[#allocation3 + $0x30] sm:$0xff]
          %v707 = vld [vmem:[#allocation3 + $0x38] sm:$0xff]
          %v708 = vld [vmem:[#allocation3 + $0x40] sm:$0xff]
          %v709 = vld [vmem:[#allocation3 + $0x48] sm:$0xff]
          %v710 = vld [vmem:[#allocation3 + $0x50] sm:$0xff]
          %v711 = vld [vmem:[#allocation3 + $0x58] sm:$0xff]
          %v712 = vld [vmem:[#allocation3 + $0x60] sm:$0xff]
          %v713 = vld [vmem:[#allocation3 + $0x68] sm:$0xff]
          %v714 = vld [vmem:[#allocation3 + $0x70] sm:$0xff]
          %v715 = vld [vmem:[#allocation3 + $0x78] sm:$0xff]
          %v716 = vperm.slane %v595, 0
          %717 = vmatpush.msra.mxu0 %v715
          %718 = vmatpush.msra.mxu0 %v714
          %719 = vmatpush.msra.mxu0 %v713
          %720 = vmatpush.msra.mxu0 %v712
          %721 = vmatpush.msra.mxu0 %v711
          %722 = vmatpush.msra.mxu0 %v710
          %723 = vmatpush.msra.mxu0 %v709
          %724 = vmatpush.msra.mxu0 %v708
          %725 = vmatpush.msra.mxu0 %v707
          %726 = vmatpush.msra.mxu0 %v706
          %727 = vmatpush.msra.mxu0 %v705
          %728 = vmatpush.msra.mxu0 %v704
          %729 = vmatpush.msra.mxu0 %v703
          %730 = vmatpush.msra.mxu0 %v702
          %731 = vmatpush.msra.mxu0 %v701
          %732 = vmatpush.msra.mxu0 %v700
          %733 = vmatmul.f32.gmra.mxu0 %v698
          %v734 = vpop.f32.mrf.mxu0
          %v735 = vadd.f32 %v716, %v734
          %736 = vmatmul.f32.gmra.mxu0 %v699
          %v737 = vpop.f32.mrf.mxu0
          %v738 = vadd.f32 %v716, %v737
          %739 = vdwg.mxu0
          %v740 = vmax.f32 %v735, 0.0
          %v741 = vmax.f32 %v738, 0.0
          %v742 = vrot.slane %v740, 4
          %v743 = vadd.f32 %v740, %v742
          %v744 = vrot.slane %v743, 2
          %v745 = vadd.f32 %v743, %v744
          %v746 = vrot.slane %v745, 1
          %v747 = vadd.f32 %v745, %v746
          %v748 = vrot.slane %v741, 4
          %v749 = vadd.f32 %v741, %v748
          %v750 = vrot.slane %v749, 2
          %v751 = vadd.f32 %v749, %v750
          %v752 = vrot.slane %v751, 1
          %v753 = vadd.f32 %v751, %v752
          %v754 = vrcp.pop 8.0
          %v755 = vmul.f32 8.0, %v754
          %v756 = vsub.f32 1.0, %v755
          %v757 = vmul.f32 %v754, %v756
          %v758 = vadd.f32 %v754, %v757
          %vm759 = vweird.f32 %v754
          %v760 = vsel %vm759, %v754, %v758
          %v761 = vmul.f32 %v747, %v760
          %v762 = vmul.f32 %v753, %v760
          %v763 = vld [vmem:[#allocation5] sm:$0xff]
          %v764 = vld [vmem:[#allocation5 + $0x8] sm:$0xff]
          %v765 = vld [vmem:[#allocation5 + $0x10] sm:$0xff]
          %v766 = vld [vmem:[#allocation5 + $0x18] sm:$0xff]
          %v767 = vld [vmem:[#allocation5 + $0x20] sm:$0xff]
          %v768 = vld [vmem:[#allocation5 + $0x28] sm:$0xff]
          %v769 = vld [vmem:[#allocation5 + $0x30] sm:$0xff]
          %v770 = vld [vmem:[#allocation5 + $0x38] sm:$0xff]
          %v771 = vld [vmem:[#allocation5 + $0x40] sm:$0xff]
          %v772 = vld [vmem:[#allocation5 + $0x48] sm:$0xff]
          %v773 = vld [vmem:[#allocation5 + $0x50] sm:$0xff]
          %v774 = vld [vmem:[#allocation5 + $0x58] sm:$0xff]
          %v775 = vld [vmem:[#allocation5 + $0x60] sm:$0xff]
          %v776 = vld [vmem:[#allocation5 + $0x68] sm:$0xff]
          %v777 = vld [vmem:[#allocation5 + $0x70] sm:$0xff]
          %v778 = vld [vmem:[#allocation5 + $0x78] sm:$0xff]
          %v779 = vperm.slane %v596, 0
          %vm782 = vcmask 1041409
          %v783 = vsel %vm782, %v762, %v761
          %785 = vmatpush.msra.mxu0 %v778
          %786 = vmatpush.msra.mxu0 %v777
          %787 = vmatpush.msra.mxu0 %v776
          %788 = vmatpush.msra.mxu0 %v775
          %789 = vmatpush.msra.mxu0 %v774
          %790 = vmatpush.msra.mxu0 %v773
          %791 = vmatpush.msra.mxu0 %v772
          %792 = vmatpush.msra.mxu0 %v771
          %793 = vmatpush.msra.mxu0 %v770
          %794 = vmatpush.msra.mxu0 %v769
          %795 = vmatpush.msra.mxu0 %v768
          %796 = vmatpush.msra.mxu0 %v767
          %797 = vmatpush.msra.mxu0 %v766
          %798 = vmatpush.msra.mxu0 %v765
          %799 = vmatpush.msra.mxu0 %v764
          %800 = vmatpush.msra.mxu0 %v763
          %801 = vmatmul.f32.gmra.mxu0 %v783
          %v802 = vpop.f32.mrf.mxu0
          %v803 = vadd.f32 %v779, %v802
          %804 = vdwg.mxu0
          %805 = vst [vmem:[#allocation2] sm:$0x3] %v803
        $region88: #{tpu_custom_call.1} parent=71 // pred_fallthru
          _
        %v806 = vld [vmem:[%s577] sm:$0xff]
        %v807 = vld [vmem:[%s577 + $0x8] sm:$0xff]
        %v808 = vld [vmem:[#allocation2] sm:$0x3]
        %v810 = vrot.slane %v808, 1
        %v811 = vperm.slane %v808, 0
        %v812 = vperm.slane %v810, 0
        %v815 = vld [vmem:[%s6] sm:$0x1]
        %817 = vset.pattern.permute.xlu0 0
        %818 = vperm.xlu0 %817, %v806
        %v819 = vpop.permute.xlu0 %818
        %822 = vset.pattern.permute.xlu0 0
        %823 = vperm.xlu0 %822, %v807
        %v824 = vpop.permute.xlu0 %823
        %v826 = vperm.slane %v815, 0
        %v827 = vmul.f32 %v819, %v826
        %v828 = vmul.f32 %v824, %v826
        %v829 = vadd.f32 %v811, %v827
        %v830 = vadd.f32 %v812, %v828
        %v831 = vld [vmem:[%s6 + $0x1] sm:$0x1]
        %832 = vset.pattern.permute.xlu0 1
        %833 = vperm.xlu0 %832, %v806
        %v834 = vpop.permute.xlu0 %833
        %836 = vset.pattern.permute.xlu0 1
        %837 = vperm.xlu0 %836, %v807
        %v838 = vpop.permute.xlu0 %837
        %v840 = vperm.slane %v831, 0
        %v841 = vmul.f32 %v834, %v840
        %v842 = vmul.f32 %v838, %v840
        %v843 = vadd.f32 %v829, %v841
        %v844 = vadd.f32 %v830, %v842
        %v845 = vmax.f32 %v843, 0.0
        %v846 = vmax.f32 %v844, 0.0
        %v847 = vld [vmem:[#allocation7] sm:$0xff]
        %v848 = vld [vmem:[#allocation7 + $0x8] sm:$0xff]
        %v849 = vld [vmem:[#allocation7 + $0x10] sm:$0xff]
        %v850 = vld [vmem:[#allocation7 + $0x18] sm:$0xff]
        %v851 = vld [vmem:[#allocation7 + $0x20] sm:$0xff]
        %v852 = vld [vmem:[#allocation7 + $0x28] sm:$0xff]
        %v853 = vld [vmem:[#allocation7 + $0x30] sm:$0xff]
        %v854 = vld [vmem:[#allocation7 + $0x38] sm:$0xff]
        %v855 = vld [vmem:[#allocation7 + $0x40] sm:$0xff]
        %v856 = vld [vmem:[#allocation7 + $0x48] sm:$0xff]
        %v857 = vld [vmem:[#allocation7 + $0x50] sm:$0xff]
        %v858 = vld [vmem:[#allocation7 + $0x58] sm:$0xff]
        %v859 = vld [vmem:[#allocation7 + $0x60] sm:$0xff]
        %v860 = vld [vmem:[#allocation7 + $0x68] sm:$0xff]
        %v861 = vld [vmem:[#allocation7 + $0x70] sm:$0xff]
        %v862 = vld [vmem:[#allocation7 + $0x78] sm:$0xff]
        %v863 = vperm.slane %v597, 0
        %864 = vmatpush.msra.mxu0 %v862
        %865 = vmatpush.msra.mxu0 %v861
        %866 = vmatpush.msra.mxu0 %v860
        %867 = vmatpush.msra.mxu0 %v859
        %868 = vmatpush.msra.mxu0 %v858
        %869 = vmatpush.msra.mxu0 %v857
        %870 = vmatpush.msra.mxu0 %v856
        %871 = vmatpush.msra.mxu0 %v855
        %872 = vmatpush.msra.mxu0 %v854
        %873 = vmatpush.msra.mxu0 %v853
        %874 = vmatpush.msra.mxu0 %v852
        %875 = vmatpush.msra.mxu0 %v851
        %876 = vmatpush.msra.mxu0 %v850
        %877 = vmatpush.msra.mxu0 %v849
        %878 = vmatpush.msra.mxu0 %v848
        %879 = vmatpush.msra.mxu0 %v847
        %880 = vmatmul.f32.gmra.mxu0 %v845
        %v881 = vpop.f32.mrf.mxu0
        %v882 = vadd.f32 %v863, %v881
        %883 = vmatmul.f32.gmra.mxu0 %v846
        %v884 = vpop.f32.mrf.mxu0
        %v885 = vadd.f32 %v863, %v884
        %886 = vdwg.mxu0
        %v887 = vmax.f32 %v882, 0.0
        %v888 = vmax.f32 %v885, 0.0
        %v889 = vld [vmem:[%s11] sm:$0xff]
        %v890 = vld [vmem:[%s11 + $0x8] sm:$0xff]
        %v891 = vld [vmem:[%s11 + $0x10] sm:$0xff]
        %v892 = vld [vmem:[%s11 + $0x18] sm:$0xff]
        %v893 = vld [vmem:[%s11 + $0x20] sm:$0xff]
        %v894 = vld [vmem:[%s11 + $0x28] sm:$0xff]
        %v895 = vld [vmem:[%s11 + $0x30] sm:$0xff]
        %v896 = vld [vmem:[%s11 + $0x38] sm:$0xff]
        %v897 = vld [vmem:[%s11 + $0x40] sm:$0xff]
        %v898 = vld [vmem:[%s11 + $0x48] sm:$0xff]
        %v899 = vld [vmem:[%s11 + $0x50] sm:$0xff]
        %v900 = vld [vmem:[%s11 + $0x58] sm:$0xff]
        %v901 = vld [vmem:[%s11 + $0x60] sm:$0xff]
        %v902 = vld [vmem:[%s11 + $0x68] sm:$0xff]
        %v903 = vld [vmem:[%s11 + $0x70] sm:$0xff]
        %v904 = vld [vmem:[%s11 + $0x78] sm:$0xff]
        %v905 = vperm.slane %v598, 0
        %906 = vmatpush.msra.mxu0 %v904
        %907 = vmatpush.msra.mxu0 %v903
        %908 = vmatpush.msra.mxu0 %v902
        %909 = vmatpush.msra.mxu0 %v901
        %910 = vmatpush.msra.mxu0 %v900
        %911 = vmatpush.msra.mxu0 %v899
        %912 = vmatpush.msra.mxu0 %v898
        %913 = vmatpush.msra.mxu0 %v897
        %914 = vmatpush.msra.mxu0 %v896
        %915 = vmatpush.msra.mxu0 %v895
        %916 = vmatpush.msra.mxu0 %v894
        %917 = vmatpush.msra.mxu0 %v893
        %918 = vmatpush.msra.mxu0 %v892
        %919 = vmatpush.msra.mxu0 %v891
        %920 = vmatpush.msra.mxu0 %v890
        %921 = vmatpush.msra.mxu0 %v889
        %922 = vmatmul.f32.gmra.mxu0 %v887
        %v923 = vpop.f32.mrf.mxu0
        %v924 = vadd.f32 %v905, %v923
        %925 = vmatmul.f32.gmra.mxu0 %v888
        %v926 = vpop.f32.mrf.mxu0
        %v927 = vadd.f32 %v905, %v926
        %928 = vdwg.mxu0
        %929 = vxpose.xlu0.b32.start [1/16] %v924, 128
        %930 = vxpose.xlu0.b32.cont [2/16] %v927, 128
        %931 = vxpose.xlu0.b32.cont [3/16] 0.0, 128
        %932 = vxpose.xlu0.b32.cont [4/16] 0.0, 128
        %933 = vxpose.xlu0.b32.cont [5/16] 0.0, 128
        %934 = vxpose.xlu0.b32.cont [6/16] 0.0, 128
        %935 = vxpose.xlu0.b32.cont [7/16] 0.0, 128
        %936 = vxpose.xlu0.b32.cont [8/16] 0.0, 128
        %937 = vxpose.xlu0.b32.cont [9/16] 0.0, 128
        %938 = vxpose.xlu0.b32.cont [10/16] 0.0, 128
        %939 = vxpose.xlu0.b32.cont [11/16] 0.0, 128
        %940 = vxpose.xlu0.b32.cont [12/16] 0.0, 128
        %941 = vxpose.xlu0.b32.cont [13/16] 0.0, 128
        %942 = vxpose.xlu0.b32.cont [14/16] 0.0, 128
        %943 = vxpose.xlu0.b32.cont [15/16] 0.0, 128
        %944 = vxpose.xlu0.b32.end [16/16] 0.0, 128
        %v945 = vpop.trf.xlu0
        %v946 = vpop.trf.xlu0
        %v947 = vpop.trf.xlu0
        %v948 = vpop.trf.xlu0
        %v949 = vpop.trf.xlu0
        %v950 = vpop.trf.xlu0
        %v951 = vpop.trf.xlu0
        %v952 = vpop.trf.xlu0
        %v953 = vpop.trf.xlu0
        %v954 = vpop.trf.xlu0
        %v955 = vpop.trf.xlu0
        %v956 = vpop.trf.xlu0
        %v957 = vpop.trf.xlu0
        %v958 = vpop.trf.xlu0
        %v959 = vpop.trf.xlu0
        %v960 = vpop.trf.xlu0
        %v961 = vmax.f32 %v945, 0.0
        %vm962 = vcmp.ne.f32.partialorder %v945, %v945
        %v963 = vadd.f32 %v945, 0.0
        %v964 = vand.u32 2147483647, %v945
        %v965 = vsub.f32 0.0, %v964
        %v966 = vmul.f32 %v965, 1.442695
        %v967 = vpow.pop %v966
        %v968 = vadd.f32 %v967, 1.0
        %v969 = vlog2.pop %v968
        %v970 = vmul.f32 %v969, 0.6931472
        %v971 = vmul.f32 -0.5, %v967
        %v972 = vadd.f32 %v971, 1.0
        %v973 = vmul.f32 %v972, %v967
        %v974 = vand.u32 2147483647, %v967
        %vm975 = vcmp.lt.f32.partialorder %v974, 0.0004427343
        %v976 = vsel %vm975, %v973, %v970
        %v977 = vadd.f32 %v961, %v976
        %v978 = vsel %vm962, %v963, %v977
        %v979 = vmul.f32 %v978, 0.9
        %v980 = vadd.f32 %v979, 0.1
        %v981 = vld [vmem:[%s584] sm:$0x1]
        %v982 = vsub.f32 %v981, %v945
        %984 = vst [vmem:[#allocation1] sm:$0xff] %v980
        %s985 = scalar_lea.vmem [#allocation1], 1
        %v986 = vld [vmem:[%s985] ss:$9 sm:$0xff]
        %v988 = vrcp.pop %v986
        %v989 = vmul.f32 %v986, %v988
        %v990 = vsub.f32 1.0, %v989
        %v991 = vmul.f32 %v988, %v990
        %v992 = vadd.f32 %v988, %v991
        %vm993 = vweird.f32 %v986
        %vm994 = vweird.f32 %v988
        %vm995 = vmor %vm993, %vm994
        %v996 = vsel %vm995, %v988, %v992
        %v997 = vand.u32 2147483647, %v986
        %vm998 = vcmp.eq.f32.partialorder %v997, 8.507059e+37
        %v999 = vand.u32 %v986, 2147483648
        %v1000 = vor.u32 1.1754944e-38, %v999
        %v1001 = vsel %vm998, %v1000, %v996
        %v1002 = vmul.f32 %v982, %v1001
        %v1003 = vmul.f32 %v1002, %v1002
        %v1004 = vmul.f32 %v1003, -0.5
        %v1005 = vlog2.pop %v980
        %v1006 = vmul.f32 %v1005, 0.6931472
        %1008 = vst [vmem:[#allocation1] sm:$0xff] %v1006
        %s1009 = scalar_lea.vmem [#allocation1], 1
        %v1010 = vld [vmem:[%s1009] ss:$9 sm:$0xff]
        %v1012 = vsub.f32 %v1004, %v1010
        %v1013 = vsub.f32 %v1012, 0.9189385
        %v1015 = vrot.slane %v945, 7
        %v1017 = vrot.slane %v980, 7
        %vm1019 = vcmask 1040384
        %v1020 = vsel %vm1019, %v1013, %v1015
        %vm1021 = vcmask 1041408
        %v1022 = vsel %vm1021, %v1020, %v1017
        %vm1023 = vcmask 124928
        %1024 = vst.msk [vmem:[%s592] sm:$0x7] %vm1023, %v1022
        %p1025 = scmp.lt.s32.totalorder %s30, 1
        %s1026 = scalar_select %p1025, %s30, 1
        %p1027 = scmp.lt.s32.totalorder %s31, 1
        %s1028 = scalar_select %p1027, %s31, 1
        %s1029 = smul.addr %s1026, 2
        %s1030 = sadd.s32 %s1028, %s1029
        %s1031 = smul.addr %s1030, 4
        %s1032 = scalar_lea.vmem %s13, %s1031
        // Predicated region
        $region89: #{tpu_custom_call.1} parent=71 // pred_check
          %p1033 = pneg %p355
        $region90: #{tpu_custom_call.1} parent=71 // pred_check_branch
          %1035 = sbr.rel (%p1033) target = $region92
        $region91: #{tpu_custom_call.1} parent=71 // pred_region
          _
        $region92: #{tpu_custom_call.1} parent=71 // pred_fallthru
          _
      $region72: #{tpu_custom_call.1} parent=5 // pred_fallthru
        _
      %p1036 = scmp.le.s32.totalorder 2, %s21
      // Predicated region
      $region93: #{tpu_custom_call.1} parent=5 // pred_check
        %p1037 = pneg %p1036
      $region94: #{tpu_custom_call.1} parent=5 // pred_check_branch
        %1039 = sbr.rel (%p1037) target = $region96
      $region95: #{tpu_custom_call.1} parent=5 // pred_region
        %s1040 = ssub.s32 %s21, 2
        // Predicated region
        $region97: #{tpu_custom_call.1} parent=95 // pred_check
          %p1041 = pneg %p361
        $region98: #{tpu_custom_call.1} parent=95 // pred_check_branch
          %1043 = sbr.rel (%p1041) target = $region100
        $region99: #{tpu_custom_call.1} parent=95 // pred_region
          %p1044 = scmp.lt.s32.totalorder %s32, 1
          %s1045 = scalar_select %p1044, %s32, 1
          %p1046 = scmp.lt.s32.totalorder %s33, 1
          %s1047 = scalar_select %p1046, %s33, 1
          %s1048 = smul.addr %s1045, 2
          %s1049 = sadd.s32 %s1047, %s1048
          %s1050 = smul.addr %s1049, 4
          %s1051 = scalar_lea.vmem %s13, %s1050
        $region100: #{tpu_custom_call.1} parent=95 // pred_fallthru
          _
      $region96: #{tpu_custom_call.1} parent=5 // pred_fallthru
        _
    $region6: #{tpu_custom_call.1} parent=1 // loop_footer
      %s25 = sadd.s32 1, %s21
    $region7: #{tpu_custom_call.1} parent=1 // loop_footer_branch
      %20 = sbr.rel target = $region3
    $region8: #{tpu_custom_call.1} parent=1 // loop_exit
      _
    %1052 = vsyncpa [#allocation4], 1
    %s1053 = scalar_lea.sflag [#allocation4], 1
    %1054 = vsyncpa %s1053, 1
    %1055 = vsyncpa [#allocation6], 1

</llo_original>
